<compile_context>
chip_gen: v7x
topology: tpu7x:2x2x1
jax: 0.10.0
libtpu: 0.0.40
codegen_flags: <defaults>
</compile_context>

<pallas_src>
import jax
import jax.numpy as jnp
from jax.experimental import pallas as pl
from jax.experimental.pallas import tpu as pltpu

_BN_EPS = 1e-5
_NEG_SLOPE = 0.01   # torch.nn.LeakyReLU default


def _batch_norm(x, gamma, beta):
    # Fresh-module training-mode BatchNorm (batch statistics), eps=1e-5.
    mu = jnp.mean(x, axis=0, keepdims=True)
    var = jnp.mean((x - mu) ** 2, axis=0, keepdims=True)
    return (x - mu) * jax.lax.rsqrt(var + _BN_EPS) * gamma + beta


def _leaky_relu(x):
    return jnp.where(x > 0, x, _NEG_SLOPE * x)


def _bf16(x):
    return x.astype(jnp.bfloat16)


_N_FIXED_IN = 8     # x_pad, src, dst, eattr, p, pT, we_cat_t, be_cat
_LAYER_KEYS = ("w1_t", "b1", "g1", "bt1", "w2_t", "b2", "bng", "bnb")
_CLF_KEYS = ("w1a_t", "w1b_t", "b1", "g1", "bt1", "w2_t", "b2", "g2", "bt2",
             "w3", "b3")


# ---------------------------------------------------------------------------
# Single fused kernel for the whole forward pass.
#   fixed inputs:
#     x_pad  [N, H]  f32 (node feats zero-padded to `hidden`)         VMEM
#     src    [E]     int32 edge source node ids                       SMEM
#     dst    [E]     int32 edge destination node ids                  SMEM
#     eattr  [E, Fe] bf16                                             VMEM
#     p      [N, G]  f32 one-hot(batch)                               VMEM
#     pT     [G, N]  f32                                              VMEM
#     we_cat_t [Fe, L*H] bf16 (all layers' edge weights, padded)      VMEM
#     be_cat   [1,  L*H] f32  (all layers' edge biases, padded)       VMEM
#   per conv layer (8 refs): w1_t, b1, g1, bt1, w2_t, b2, bng, bnb
#   classifier (11 refs):    w1a_t, w1b_t, b1, g1, bt1, w2_t, b2, g2, bt2, w3, b3
#   output: [N, 1] f32 (per-node logit)
#   scratch: xbuf [N,H] f32, msgbuf [E,H] f32, aggrbuf [N,H] f32
# ---------------------------------------------------------------------------
def _make_m7_kernel(num_layers, n_edges, hidden, eps):
    n_in = _N_FIXED_IN + len(_LAYER_KEYS) * num_layers + len(_CLF_KEYS)

    def kernel(*refs):
        (x_ref, src_ref, dst_ref, eattr_ref, p_ref, pT_ref,
         wecat_ref, becat_ref) = refs[:_N_FIXED_IN]
        out_ref = refs[n_in]
        xbuf, msgbuf, aggrbuf = refs[n_in + 1:]

        # Node features stay resident in a writable f32 VMEM scratch so the
        # per-edge gather can row-index them dynamically across all layers.
        xbuf[...] = x_ref[...]

        # All layers' edge projections in ONE wide matmul (tiny-K amortized);
        # concatenated biases added once.  Per-layer slices are lane-aligned.
        e_proj_all = (jnp.dot(eattr_ref[...], wecat_ref[...],
                              preferred_element_type=jnp.float32)
                      + becat_ref[...])

        idx = _N_FIXED_IN
        for layer in range(num_layers):
            (w1_t, b1, g1, bt1, w2_t, b2, bng, bnb) = refs[idx:idx + 8]
            idx += 8

            # --- gather: msg[e] = x[src[e]]  (index-based, no one-hot matmul) -
            def gather_body(e, carry):
                s = src_ref[e]
                msgbuf[pl.ds(e, 1), :] = xbuf[pl.ds(s, 1), :]
                return carry
            jax.lax.fori_loop(0, n_edges, gather_body, 0)

            # relu(x_src + We @ edge_attr + be) for this layer (f32, exact).
            e_proj = e_proj_all[:, layer * hidden:(layer + 1) * hidden]
            msgbuf[...] = jnp.maximum(msgbuf[...] + e_proj, 0.0)

            # --- scatter-add: aggr[dst[e]] += msg[e] --------------------------
            # TODO(synk): serial RMW loop; for large E replace with a blocked
            # segment-sum over an edge-block grid axis (accumulator BlockSpec).
            aggrbuf[...] = jnp.zeros_like(aggrbuf)

            def scatter_body(e, carry):
                d = dst_ref[e]
                aggrbuf[pl.ds(d, 1), :] = (aggrbuf[pl.ds(d, 1), :]
                                           + msgbuf[pl.ds(e, 1), :])
                return carry
            jax.lax.fori_loop(0, n_edges, scatter_body, 0)

            # --- GINE update: nn((1+eps) x + aggr), nn = Lin->BN->LeakyReLU->Lin
            h = (1.0 + eps) * xbuf[...] + aggrbuf[...]
            h = jnp.dot(_bf16(h), w1_t[...],
                        preferred_element_type=jnp.float32) + b1[...]
            h = _leaky_relu(_batch_norm(h, g1[...], bt1[...]))
            h = jnp.dot(_bf16(h), w2_t[...],
                        preferred_element_type=jnp.float32) + b2[...]

            # outer BatchNorm on every layer except the last, then LeakyReLU
            if layer != num_layers - 1:
                h = _batch_norm(h, bng[...], bnb[...])
            xbuf[...] = _leaky_relu(h)

        # --- global_add_pool + reassociated context + classifier MLP ---------
        (cw1a, cw1b, cb1, cg1, cbt1, cw2, cb2, cg2, cbt2, cw3, cb3) = \
            refs[idx:idx + 11]
        xf = xbuf[...]
        pooled = jnp.dot(pT_ref[...], xf, preferred_element_type=jnp.float32)
        # ctx = P @ (pooled @ W1b): folds concat([x, pooled_expanded]) into a
        # split first Linear and never materializes the [N, hidden] expansion.
        ctx = jnp.dot(
            p_ref[...],
            jnp.dot(_bf16(pooled), cw1b[...], preferred_element_type=jnp.float32),
            preferred_element_type=jnp.float32)
        z = (jnp.dot(_bf16(xf), cw1a[...], preferred_element_type=jnp.float32)
             + ctx + cb1[...])
        z = _leaky_relu(_batch_norm(z, cg1[...], cbt1[...]))
        # Dropout(0.2) -> identity (eval-mode forward)
        z = jnp.dot(_bf16(z), cw2[...], preferred_element_type=jnp.float32) + cb2[...]
        z = _leaky_relu(_batch_norm(z, cg2[...], cbt2[...]))
        # Dropout(0.2) -> identity
        # 1-wide head as a VPU row reduction (no padded MXU columns, tiny store).
        out_ref[...] = jnp.sum(z * cw3[...], axis=-1, keepdims=True) + cb3[...]

    return kernel


# ---------------------------------------------------------------------------
# Full M7 forward: one pallas_call
# ---------------------------------------------------------------------------
def m7_forward(x, edge_index, edge_attr, batch, params):
    n_nodes, f_node = x.shape
    n_edges = edge_attr.shape[0]
    hidden = int(params["hidden"])
    n_graphs = int(params["num_graphs"])
    num_layers = len(params["conv"])
    assert f_node <= hidden

    # Layer-0 node features zero-padded to `hidden` lanes (exact: the matching
    # weight rows/columns are zero-padded too in make_params).
    x_pad = jnp.zeros((n_nodes, hidden), jnp.float32)
    x_pad = x_pad.at[:, :f_node].set(x.astype(jnp.float32))

    src = edge_index[0].astype(jnp.int32)
    dst = edge_index[1].astype(jnp.int32)

    # Graph-pool assignment as a tiny [N, G] one-hot (N*G, not E*N); exact f32.
    p = jax.nn.one_hot(batch, n_graphs, dtype=jnp.float32)     # [N, G]
    pT = p.T                                                    # [G, N]

    inputs = [x_pad, src, dst, edge_attr.astype(jnp.bfloat16), p, pT,
              params["we_cat_t"], params["be_cat"]]
    for lp in params["conv"]:
        inputs += [lp[k] for k in _LAYER_KEYS]
    inputs += [params["clf"][k] for k in _CLF_KEYS]

    vmem = pl.BlockSpec(memory_space=pltpu.MemorySpace.VMEM)
    smem = pl.BlockSpec(memory_space=pltpu.MemorySpace.SMEM)
    in_specs = [vmem, smem, smem] + [vmem] * (len(inputs) - 3)

    scratch_shapes = [
        pltpu.VMEM((n_nodes, hidden), jnp.float32),   # xbuf  (node features)
        pltpu.VMEM((n_edges, hidden), jnp.float32),   # msgbuf (edge messages)
        pltpu.VMEM((n_nodes, hidden), jnp.float32),   # aggrbuf (scatter accumulator)
    ]

    # VMEM limit sized from the actual resident footprint (double-buffered
    # inputs + scratch + headroom), clamped to v7x's 64 MiB physical VMEM.
    def nbytes(a):
        return int(a.size) * jnp.dtype(a.dtype).itemsize
    resident = sum(nbytes(a) for a in inputs) + n_nodes * 4
    scratch_bytes = (2 * n_nodes + n_edges) * hidden * 4
    vmem_limit = int(min(max(2 * resident + scratch_bytes + (8 << 20), 32 << 20),
                         64 << 20))

    out = pl.pallas_call(
        _make_m7_kernel(num_layers, n_edges, hidden, float(params["eps"])),
        out_shape=jax.ShapeDtypeStruct((n_nodes, 1), jnp.float32),
        in_specs=in_specs,
        out_specs=vmem,
        scratch_shapes=scratch_shapes,
        compiler_params=pltpu.CompilerParams(vmem_limit_bytes=vmem_limit),
    )(*inputs)
    return out[:, 0]   # torch.flatten equivalent


# ---------------------------------------------------------------------------
# Deterministic parameter construction (kernel-ready layout:
#   weights pre-transposed + bf16; biases / BN params f32 (1, F);
#   layer-0 widths zero-padded to `hidden`; edge weights concatenated)
# ---------------------------------------------------------------------------
def make_params(key, f_node, f_edge, hidden, mid, num_layers, num_graphs, eps=0.1):
    def lin(k, out_f, in_f):
        kw, kb = jax.random.split(k)
        w = jax.random.normal(kw, (out_f, in_f), jnp.float32) * (1.0 / jnp.sqrt(in_f))
        b = jax.random.normal(kb, (1, out_f), jnp.float32) * 0.01
        return w, b

    def t16(w):   # pre-transposed, bf16, MXU-ready
        return jnp.asarray(w.T, jnp.bfloat16)

    params = {"conv": [], "eps": eps, "num_graphs": num_graphs, "hidden": hidden}
    we_cat, be_cat = [], []
    in_c = f_node
    for _ in range(num_layers):
        key, k_e, k_1, k_2 = jax.random.split(key, 4)
        we, be = lin(k_e, in_c, f_edge)        # edge Linear(Fe -> in_c)
        w1, b1 = lin(k_1, hidden, in_c)        # nn Linear(in_c -> hidden)
        w2, b2 = lin(k_2, hidden, hidden)      # nn Linear(hidden -> hidden)

        # zero-pad the in_c feature width to `hidden` (exact; pads only layer 0)
        we_t_pad = jnp.zeros((f_edge, hidden), jnp.float32).at[:, :in_c].set(we.T)
        be_pad = jnp.zeros((1, hidden), jnp.float32).at[:, :in_c].set(be)
        w1_t_pad = jnp.zeros((hidden, hidden), jnp.float32).at[:in_c, :].set(w1.T)
        we_cat.append(we_t_pad)
        be_cat.append(be_pad)

        params["conv"].append(dict(
            w1_t=jnp.asarray(w1_t_pad, jnp.bfloat16), b1=b1,
            g1=jnp.ones((1, hidden), jnp.float32),
            bt1=jnp.zeros((1, hidden), jnp.float32),
            w2_t=t16(w2), b2=b2,
            bng=jnp.ones((1, hidden), jnp.float32),
            bnb=jnp.zeros((1, hidden), jnp.float32)))
        in_c = hidden

    params["we_cat_t"] = jnp.asarray(jnp.concatenate(we_cat, axis=1), jnp.bfloat16)
    params["be_cat"] = jnp.concatenate(be_cat, axis=1)

    key, kc1, kc2, kc3 = jax.random.split(key, 4)
    wc1, bc1 = lin(kc1, mid, in_c * 2)
    wc2, bc2 = lin(kc2, mid, mid)
    wc3, bc3 = lin(kc3, 1, mid)
    params["clf"] = dict(
        w1a_t=t16(wc1[:, :in_c]),    # x half of the split first Linear
        w1b_t=t16(wc1[:, in_c:]),    # pooled-context half (fuses away concat)
        b1=bc1,
        g1=jnp.ones((1, mid), jnp.float32), bt1=jnp.zeros((1, mid), jnp.float32),
        w2_t=t16(wc2), b2=bc2,
        g2=jnp.ones((1, mid), jnp.float32), bt2=jnp.zeros((1, mid), jnp.float32),
        w3=wc3,                      # [1, mid] f32 — used as a VPU row reduction
        b3=bc3)                      # [1, 1]  f32
    return params


if __name__ == "__main__":
    key = jax.random.PRNGKey(0)

    # Small synthetic graph batch (nodes sorted by graph id, standard PyG layout).
    N_NODES, N_EDGES, N_GRAPHS = 16, 32, 2
    F_NODE, F_EDGE = 8, 4            # params['num_node_features'], params['num_edge_features']
    HIDDEN, MID = 128, 128           # size_conv_layers, size_final_mlp_layers (lane-aligned)
    NUM_LAYERS = 2                   # num_conv_layers

    key, kx, ke, ksrc, kdst = jax.random.split(key, 5)
    x = jax.random.normal(kx, (N_NODES, F_NODE), jnp.float32)
    edge_attr = jax.random.normal(ke, (N_EDGES, F_EDGE), jnp.float32)
    edge_src = jax.random.randint(ksrc, (N_EDGES,), 0, N_NODES)
    edge_dst = jax.random.randint(kdst, (N_EDGES,), 0, N_NODES)
    edge_index = jnp.stack([edge_src, edge_dst], axis=0)          # [2, E]
    batch = jnp.array([0] * 9 + [1] * 7, dtype=jnp.int32)         # node -> graph id

    params = make_params(key, F_NODE, F_EDGE, HIDDEN, MID, NUM_LAYERS, N_GRAPHS)

    out = m7_forward(x, edge_index, edge_attr, batch, params)
    out = jax.block_until_ready(out)
    assert out.shape == (N_NODES,)
    assert bool(jnp.all(jnp.isfinite(out)))
    print("KERNEL_OK")
</pallas_src>

<mosaic_0001>
module attributes {stable_mosaic.version = 11 : i64} {
  func.func @kernel(%arg0: memref<16x128xf32, #tpu.memory_space<vmem>>, %arg1: memref<32xi32, #tpu.memory_space<smem>>, %arg2: memref<32xi32, #tpu.memory_space<smem>>, %arg3: memref<32x4xbf16, #tpu.memory_space<vmem>>, %arg4: memref<16x2xf32, #tpu.memory_space<vmem>>, %arg5: memref<2x16xf32, #tpu.memory_space<vmem>>, %arg6: memref<4x256xbf16, #tpu.memory_space<vmem>>, %arg7: memref<1x256xf32, #tpu.memory_space<vmem>>, %arg8: memref<128x128xbf16, #tpu.memory_space<vmem>>, %arg9: memref<1x128xf32, #tpu.memory_space<vmem>>, %arg10: memref<1x128xf32, #tpu.memory_space<vmem>>, %arg11: memref<1x128xf32, #tpu.memory_space<vmem>>, %arg12: memref<128x128xbf16, #tpu.memory_space<vmem>>, %arg13: memref<1x128xf32, #tpu.memory_space<vmem>>, %arg14: memref<1x128xf32, #tpu.memory_space<vmem>>, %arg15: memref<1x128xf32, #tpu.memory_space<vmem>>, %arg16: memref<128x128xbf16, #tpu.memory_space<vmem>>, %arg17: memref<1x128xf32, #tpu.memory_space<vmem>>, %arg18: memref<1x128xf32, #tpu.memory_space<vmem>>, %arg19: memref<1x128xf32, #tpu.memory_space<vmem>>, %arg20: memref<128x128xbf16, #tpu.memory_space<vmem>>, %arg21: memref<1x128xf32, #tpu.memory_space<vmem>>, %arg22: memref<1x128xf32, #tpu.memory_space<vmem>>, %arg23: memref<1x128xf32, #tpu.memory_space<vmem>>, %arg24: memref<128x128xbf16, #tpu.memory_space<vmem>>, %arg25: memref<128x128xbf16, #tpu.memory_space<vmem>>, %arg26: memref<1x128xf32, #tpu.memory_space<vmem>>, %arg27: memref<1x128xf32, #tpu.memory_space<vmem>>, %arg28: memref<1x128xf32, #tpu.memory_space<vmem>>, %arg29: memref<128x128xbf16, #tpu.memory_space<vmem>>, %arg30: memref<1x128xf32, #tpu.memory_space<vmem>>, %arg31: memref<1x128xf32, #tpu.memory_space<vmem>>, %arg32: memref<1x128xf32, #tpu.memory_space<vmem>>, %arg33: memref<1x128xf32, #tpu.memory_space<vmem>>, %arg34: memref<1x1xf32, #tpu.memory_space<vmem>>, %arg35: memref<16x1xf32, #tpu.memory_space<vmem>>, %arg36: memref<16x128xf32, #tpu.memory_space<vmem>>, %arg37: memref<32x128xf32, #tpu.memory_space<vmem>>, %arg38: memref<16x128xf32, #tpu.memory_space<vmem>>) attributes {dimension_semantics = [], scalar_prefetch = 0 : i64, scratch_operands = 3 : i64, tpu.core_type = #tpu.core_type<tc>} {
    %c0 = arith.constant 0 : index
    %c0_0 = arith.constant 0 : index
    %0 = vector.load %arg0[%c0, %c0_0] : memref<16x128xf32, #tpu.memory_space<vmem>>, vector<16x128xf32>
    %c0_1 = arith.constant 0 : index
    %c0_2 = arith.constant 0 : index
    %1 = vector.load %arg36[%c0_1, %c0_2] : memref<16x128xf32, #tpu.memory_space<vmem>>, vector<16x128xf32>
    tpu.vector_store %arg36[%c0_1, %c0_2], %0 {strides = array<i32>} : memref<16x128xf32, #tpu.memory_space<vmem>>, vector<16x128xf32>,
    %c0_3 = arith.constant 0 : index
    %c0_4 = arith.constant 0 : index
    %2 = vector.load %arg3[%c0_3, %c0_4] : memref<32x4xbf16, #tpu.memory_space<vmem>>, vector<32x4xbf16>
    %c0_5 = arith.constant 0 : index
    %c0_6 = arith.constant 0 : index
    %3 = vector.load %arg6[%c0_5, %c0_6] : memref<4x256xbf16, #tpu.memory_space<vmem>>, vector<4x256xbf16>
    %cst = arith.constant dense<0.000000e+00> : vector<32x256xf32>
    %4 = tpu.matmul %2, %3, %cst {dimension_numbers = #tpu.dot_dimension_numbers<[1], [0], [0], [1], [0, 0, 1, 1], [], []>} : vector<32x4xbf16>, vector<4x256xbf16>, vector<32x256xf32> -> vector<32x256xf32>
    %c0_7 = arith.constant 0 : index
    %c0_8 = arith.constant 0 : index
    %5 = vector.load %arg7[%c0_7, %c0_8] : memref<1x256xf32, #tpu.memory_space<vmem>>, vector<1x256xf32>
    %6 = vector.broadcast %5 : vector<1x256xf32> to vector<32x256xf32>
    %7 = arith.addf %4, %6 : vector<32x256xf32>
    %c0_i32 = arith.constant 0 : i32
    %c32_i32 = arith.constant 32 : i32
    %8 = arith.addi %c0_i32, %c32_i32 : i32
    %c1_i32 = arith.constant 1 : i32
    scf.for %arg39 = %c0_i32 to %8 step %c1_i32  : i32 {
      %244 = arith.index_cast %arg39 : i32 to index
      %245 = memref.load %arg1[%244] : memref<32xi32, #tpu.memory_space<smem>>
      %246 = arith.index_cast %245 : i32 to index
      %c0_157 = arith.constant 0 : index
      %247 = vector.load %arg36[%246, %c0_157] : memref<16x128xf32, #tpu.memory_space<vmem>>, vector<1x128xf32>
      %248 = arith.index_cast %arg39 : i32 to index
      %c0_158 = arith.constant 0 : index
      %249 = vector.load %arg37[%248, %c0_158] : memref<32x128xf32, #tpu.memory_space<vmem>>, vector<1x128xf32>
      tpu.vector_store %arg37[%248, %c0_158], %247 {strides = array<i32>} : memref<32x128xf32, #tpu.memory_space<vmem>>, vector<1x128xf32>,
    }
    %c32_i32_9 = arith.constant 32 : i32
    %9 = vector.extract_strided_slice %7 {offsets = [0, 0], sizes = [32, 128], strides = [1, 1]} : vector<32x256xf32> to vector<32x128xf32>
    %c0_10 = arith.constant 0 : index
    %c0_11 = arith.constant 0 : index
    %10 = vector.load %arg37[%c0_10, %c0_11] : memref<32x128xf32, #tpu.memory_space<vmem>>, vector<32x128xf32>
    %11 = arith.addf %10, %9 : vector<32x128xf32>
    %cst_12 = arith.constant 0.000000e+00 : f32
    %12 = vector.broadcast %cst_12 : f32 to vector<32x128xf32>
    %13 = arith.maximumf %11, %12 : vector<32x128xf32>
    %c0_13 = arith.constant 0 : index
    %c0_14 = arith.constant 0 : index
    %14 = vector.load %arg37[%c0_13, %c0_14] : memref<32x128xf32, #tpu.memory_space<vmem>>, vector<32x128xf32>
    tpu.vector_store %arg37[%c0_13, %c0_14], %13 {strides = array<i32>} : memref<32x128xf32, #tpu.memory_space<vmem>>, vector<32x128xf32>,
    %cst_15 = arith.constant 0.000000e+00 : f32
    %15 = vector.broadcast %cst_15 : f32 to vector<16x128xf32>
    %c0_16 = arith.constant 0 : index
    %c0_17 = arith.constant 0 : index
    %16 = vector.load %arg38[%c0_16, %c0_17] : memref<16x128xf32, #tpu.memory_space<vmem>>, vector<16x128xf32>
    tpu.vector_store %arg38[%c0_16, %c0_17], %15 {strides = array<i32>} : memref<16x128xf32, #tpu.memory_space<vmem>>, vector<16x128xf32>,
    %c0_i32_18 = arith.constant 0 : i32
    %c32_i32_19 = arith.constant 32 : i32
    %17 = arith.addi %c0_i32_18, %c32_i32_19 : i32
    %c1_i32_20 = arith.constant 1 : i32
    scf.for %arg39 = %c0_i32_18 to %17 step %c1_i32_20  : i32 {
      %244 = arith.index_cast %arg39 : i32 to index
      %245 = memref.load %arg2[%244] : memref<32xi32, #tpu.memory_space<smem>>
      %246 = arith.index_cast %245 : i32 to index
      %c0_157 = arith.constant 0 : index
      %247 = vector.load %arg38[%246, %c0_157] : memref<16x128xf32, #tpu.memory_space<vmem>>, vector<1x128xf32>
      %248 = arith.index_cast %arg39 : i32 to index
      %c0_158 = arith.constant 0 : index
      %249 = vector.load %arg37[%248, %c0_158] : memref<32x128xf32, #tpu.memory_space<vmem>>, vector<1x128xf32>
      %250 = arith.addf %247, %249 : vector<1x128xf32>
      %251 = arith.index_cast %245 : i32 to index
      %c0_159 = arith.constant 0 : index
      %252 = vector.load %arg38[%251, %c0_159] : memref<16x128xf32, #tpu.memory_space<vmem>>, vector<1x128xf32>
      tpu.vector_store %arg38[%251, %c0_159], %250 {strides = array<i32>} : memref<16x128xf32, #tpu.memory_space<vmem>>, vector<1x128xf32>,
    }
    %c32_i32_21 = arith.constant 32 : i32
    %c0_22 = arith.constant 0 : index
    %c0_23 = arith.constant 0 : index
    %18 = vector.load %arg36[%c0_22, %c0_23] : memref<16x128xf32, #tpu.memory_space<vmem>>, vector<16x128xf32>
    %cst_24 = arith.constant 1.100000e+00 : f32
    %19 = vector.broadcast %cst_24 : f32 to vector<16x128xf32>
    %20 = arith.mulf %19, %18 : vector<16x128xf32>
    %c0_25 = arith.constant 0 : index
    %c0_26 = arith.constant 0 : index
    %21 = vector.load %arg38[%c0_25, %c0_26] : memref<16x128xf32, #tpu.memory_space<vmem>>, vector<16x128xf32>
    %22 = arith.addf %20, %21 : vector<16x128xf32>
    %23 = arith.truncf %22 : vector<16x128xf32> to vector<16x128xbf16>
    %c0_27 = arith.constant 0 : index
    %c0_28 = arith.constant 0 : index
    %24 = vector.load %arg8[%c0_27, %c0_28] : memref<128x128xbf16, #tpu.memory_space<vmem>>, vector<128x128xbf16>
    %cst_29 = arith.constant dense<0.000000e+00> : vector<16x128xf32>
    %25 = tpu.matmul %23, %24, %cst_29 {dimension_numbers = #tpu.dot_dimension_numbers<[1], [0], [0], [1], [0, 0, 1, 1], [], []>} : vector<16x128xbf16>, vector<128x128xbf16>, vector<16x128xf32> -> vector<16x128xf32>
    %c0_30 = arith.constant 0 : index
    %c0_31 = arith.constant 0 : index
    %26 = vector.load %arg9[%c0_30, %c0_31] : memref<1x128xf32, #tpu.memory_space<vmem>>, vector<1x128xf32>
    %27 = vector.broadcast %26 : vector<1x128xf32> to vector<16x128xf32>
    %28 = arith.addf %25, %27 : vector<16x128xf32>
    %c0_32 = arith.constant 0 : index
    %c0_33 = arith.constant 0 : index
    %29 = vector.load %arg10[%c0_32, %c0_33] : memref<1x128xf32, #tpu.memory_space<vmem>>, vector<1x128xf32>
    %c0_34 = arith.constant 0 : index
    %c0_35 = arith.constant 0 : index
    %30 = vector.load %arg11[%c0_34, %c0_35] : memref<1x128xf32, #tpu.memory_space<vmem>>, vector<1x128xf32>
    %cst_36 = arith.constant dense<0.000000e+00> : vector<128xf32>
    %31 = vector.multi_reduction <add>, %28, %cst_36 [0] : vector<16x128xf32> to vector<128xf32>
    %32 = vector.shape_cast %31 : vector<128xf32> to vector<1x128xf32>
    %cst_37 = arith.constant 1.600000e+01 : f32
    %33 = vector.broadcast %cst_37 : f32 to vector<1x128xf32>
    %34 = arith.divf %32, %33 : vector<1x128xf32>
    %35 = vector.broadcast %34 : vector<1x128xf32> to vector<16x128xf32>
    %36 = arith.subf %28, %35 : vector<16x128xf32>
    %37 = arith.mulf %36, %36 : vector<16x128xf32>
    %cst_38 = arith.constant dense<0.000000e+00> : vector<128xf32>
    %38 = vector.multi_reduction <add>, %37, %cst_38 [0] : vector<16x128xf32> to vector<128xf32>
    %39 = vector.shape_cast %38 : vector<128xf32> to vector<1x128xf32>
    %cst_39 = arith.constant 1.600000e+01 : f32
    %40 = vector.broadcast %cst_39 : f32 to vector<1x128xf32>
    %41 = arith.divf %39, %40 : vector<1x128xf32>
    %42 = vector.broadcast %34 : vector<1x128xf32> to vector<16x128xf32>
    %43 = arith.subf %28, %42 : vector<16x128xf32>
    %cst_40 = arith.constant 9.99999974E-6 : f32
    %44 = vector.broadcast %cst_40 : f32 to vector<1x128xf32>
    %45 = arith.addf %41, %44 : vector<1x128xf32>
    %46 = math.rsqrt %45 : vector<1x128xf32>
    %47 = vector.broadcast %46 : vector<1x128xf32> to vector<16x128xf32>
    %48 = arith.mulf %43, %47 : vector<16x128xf32>
    %49 = vector.broadcast %29 : vector<1x128xf32> to vector<16x128xf32>
    %50 = arith.mulf %48, %49 : vector<16x128xf32>
    %51 = vector.broadcast %30 : vector<1x128xf32> to vector<16x128xf32>
    %52 = arith.addf %50, %51 : vector<16x128xf32>
    %cst_41 = arith.constant 0.000000e+00 : f32
    %53 = vector.broadcast %cst_41 : f32 to vector<16x128xf32>
    %54 = arith.cmpf ogt, %52, %53 : vector<16x128xf32>
    %cst_42 = arith.constant 0.00999999977 : f32
    %55 = vector.broadcast %cst_42 : f32 to vector<16x128xf32>
    %56 = arith.mulf %55, %52 : vector<16x128xf32>
    %57 = arith.select %54, %52, %56 : vector<16x128xi1>, vector<16x128xf32>
    %58 = arith.truncf %57 : vector<16x128xf32> to vector<16x128xbf16>
    %c0_43 = arith.constant 0 : index
    %c0_44 = arith.constant 0 : index
    %59 = vector.load %arg12[%c0_43, %c0_44] : memref<128x128xbf16, #tpu.memory_space<vmem>>, vector<128x128xbf16>
    %cst_45 = arith.constant dense<0.000000e+00> : vector<16x128xf32>
    %60 = tpu.matmul %58, %59, %cst_45 {dimension_numbers = #tpu.dot_dimension_numbers<[1], [0], [0], [1], [0, 0, 1, 1], [], []>} : vector<16x128xbf16>, vector<128x128xbf16>, vector<16x128xf32> -> vector<16x128xf32>
    %c0_46 = arith.constant 0 : index
    %c0_47 = arith.constant 0 : index
    %61 = vector.load %arg13[%c0_46, %c0_47] : memref<1x128xf32, #tpu.memory_space<vmem>>, vector<1x128xf32>
    %62 = vector.broadcast %61 : vector<1x128xf32> to vector<16x128xf32>
    %63 = arith.addf %60, %62 : vector<16x128xf32>
    %c0_48 = arith.constant 0 : index
    %c0_49 = arith.constant 0 : index
    %64 = vector.load %arg14[%c0_48, %c0_49] : memref<1x128xf32, #tpu.memory_space<vmem>>, vector<1x128xf32>
    %c0_50 = arith.constant 0 : index
    %c0_51 = arith.constant 0 : index
    %65 = vector.load %arg15[%c0_50, %c0_51] : memref<1x128xf32, #tpu.memory_space<vmem>>, vector<1x128xf32>
    %cst_52 = arith.constant dense<0.000000e+00> : vector<128xf32>
    %66 = vector.multi_reduction <add>, %63, %cst_52 [0] : vector<16x128xf32> to vector<128xf32>
    %67 = vector.shape_cast %66 : vector<128xf32> to vector<1x128xf32>
    %cst_53 = arith.constant 1.600000e+01 : f32
    %68 = vector.broadcast %cst_53 : f32 to vector<1x128xf32>
    %69 = arith.divf %67, %68 : vector<1x128xf32>
    %70 = vector.broadcast %69 : vector<1x128xf32> to vector<16x128xf32>
    %71 = arith.subf %63, %70 : vector<16x128xf32>
    %72 = arith.mulf %71, %71 : vector<16x128xf32>
    %cst_54 = arith.constant dense<0.000000e+00> : vector<128xf32>
    %73 = vector.multi_reduction <add>, %72, %cst_54 [0] : vector<16x128xf32> to vector<128xf32>
    %74 = vector.shape_cast %73 : vector<128xf32> to vector<1x128xf32>
    %cst_55 = arith.constant 1.600000e+01 : f32
    %75 = vector.broadcast %cst_55 : f32 to vector<1x128xf32>
    %76 = arith.divf %74, %75 : vector<1x128xf32>
    %77 = vector.broadcast %69 : vector<1x128xf32> to vector<16x128xf32>
    %78 = arith.subf %63, %77 : vector<16x128xf32>
    %cst_56 = arith.constant 9.99999974E-6 : f32
    %79 = vector.broadcast %cst_56 : f32 to vector<1x128xf32>
    %80 = arith.addf %76, %79 : vector<1x128xf32>
    %81 = math.rsqrt %80 : vector<1x128xf32>
    %82 = vector.broadcast %81 : vector<1x128xf32> to vector<16x128xf32>
    %83 = arith.mulf %78, %82 : vector<16x128xf32>
    %84 = vector.broadcast %64 : vector<1x128xf32> to vector<16x128xf32>
    %85 = arith.mulf %83, %84 : vector<16x128xf32>
    %86 = vector.broadcast %65 : vector<1x128xf32> to vector<16x128xf32>
    %87 = arith.addf %85, %86 : vector<16x128xf32>
    %cst_57 = arith.constant 0.000000e+00 : f32
    %88 = vector.broadcast %cst_57 : f32 to vector<16x128xf32>
    %89 = arith.cmpf ogt, %87, %88 : vector<16x128xf32>
    %cst_58 = arith.constant 0.00999999977 : f32
    %90 = vector.broadcast %cst_58 : f32 to vector<16x128xf32>
    %91 = arith.mulf %90, %87 : vector<16x128xf32>
    %92 = arith.select %89, %87, %91 : vector<16x128xi1>, vector<16x128xf32>
    %c0_59 = arith.constant 0 : index
    %c0_60 = arith.constant 0 : index
    %93 = vector.load %arg36[%c0_59, %c0_60] : memref<16x128xf32, #tpu.memory_space<vmem>>, vector<16x128xf32>
    tpu.vector_store %arg36[%c0_59, %c0_60], %92 {strides = array<i32>} : memref<16x128xf32, #tpu.memory_space<vmem>>, vector<16x128xf32>,
    %c0_i32_61 = arith.constant 0 : i32
    %c32_i32_62 = arith.constant 32 : i32
    %94 = arith.addi %c0_i32_61, %c32_i32_62 : i32
    %c1_i32_63 = arith.constant 1 : i32
    scf.for %arg39 = %c0_i32_61 to %94 step %c1_i32_63  : i32 {
      %244 = arith.index_cast %arg39 : i32 to index
      %245 = memref.load %arg1[%244] : memref<32xi32, #tpu.memory_space<smem>>
      %246 = arith.index_cast %245 : i32 to index
      %c0_157 = arith.constant 0 : index
      %247 = vector.load %arg36[%246, %c0_157] : memref<16x128xf32, #tpu.memory_space<vmem>>, vector<1x128xf32>
      %248 = arith.index_cast %arg39 : i32 to index
      %c0_158 = arith.constant 0 : index
      %249 = vector.load %arg37[%248, %c0_158] : memref<32x128xf32, #tpu.memory_space<vmem>>, vector<1x128xf32>
      tpu.vector_store %arg37[%248, %c0_158], %247 {strides = array<i32>} : memref<32x128xf32, #tpu.memory_space<vmem>>, vector<1x128xf32>,
    }
    %c32_i32_64 = arith.constant 32 : i32
    %95 = vector.extract_strided_slice %7 {offsets = [0, 128], sizes = [32, 128], strides = [1, 1]} : vector<32x256xf32> to vector<32x128xf32>
    %c0_65 = arith.constant 0 : index
    %c0_66 = arith.constant 0 : index
    %96 = vector.load %arg37[%c0_65, %c0_66] : memref<32x128xf32, #tpu.memory_space<vmem>>, vector<32x128xf32>
    %97 = arith.addf %96, %95 : vector<32x128xf32>
    %cst_67 = arith.constant 0.000000e+00 : f32
    %98 = vector.broadcast %cst_67 : f32 to vector<32x128xf32>
    %99 = arith.maximumf %97, %98 : vector<32x128xf32>
    %c0_68 = arith.constant 0 : index
    %c0_69 = arith.constant 0 : index
    %100 = vector.load %arg37[%c0_68, %c0_69] : memref<32x128xf32, #tpu.memory_space<vmem>>, vector<32x128xf32>
    tpu.vector_store %arg37[%c0_68, %c0_69], %99 {strides = array<i32>} : memref<32x128xf32, #tpu.memory_space<vmem>>, vector<32x128xf32>,
    %cst_70 = arith.constant 0.000000e+00 : f32
    %101 = vector.broadcast %cst_70 : f32 to vector<16x128xf32>
    %c0_71 = arith.constant 0 : index
    %c0_72 = arith.constant 0 : index
    %102 = vector.load %arg38[%c0_71, %c0_72] : memref<16x128xf32, #tpu.memory_space<vmem>>, vector<16x128xf32>
    tpu.vector_store %arg38[%c0_71, %c0_72], %101 {strides = array<i32>} : memref<16x128xf32, #tpu.memory_space<vmem>>, vector<16x128xf32>,
    %c0_i32_73 = arith.constant 0 : i32
    %c32_i32_74 = arith.constant 32 : i32
    %103 = arith.addi %c0_i32_73, %c32_i32_74 : i32
    %c1_i32_75 = arith.constant 1 : i32
    scf.for %arg39 = %c0_i32_73 to %103 step %c1_i32_75  : i32 {
      %244 = arith.index_cast %arg39 : i32 to index
      %245 = memref.load %arg2[%244] : memref<32xi32, #tpu.memory_space<smem>>
      %246 = arith.index_cast %245 : i32 to index
      %c0_157 = arith.constant 0 : index
      %247 = vector.load %arg38[%246, %c0_157] : memref<16x128xf32, #tpu.memory_space<vmem>>, vector<1x128xf32>
      %248 = arith.index_cast %arg39 : i32 to index
      %c0_158 = arith.constant 0 : index
      %249 = vector.load %arg37[%248, %c0_158] : memref<32x128xf32, #tpu.memory_space<vmem>>, vector<1x128xf32>
      %250 = arith.addf %247, %249 : vector<1x128xf32>
      %251 = arith.index_cast %245 : i32 to index
      %c0_159 = arith.constant 0 : index
      %252 = vector.load %arg38[%251, %c0_159] : memref<16x128xf32, #tpu.memory_space<vmem>>, vector<1x128xf32>
      tpu.vector_store %arg38[%251, %c0_159], %250 {strides = array<i32>} : memref<16x128xf32, #tpu.memory_space<vmem>>, vector<1x128xf32>,
    }
    %c32_i32_76 = arith.constant 32 : i32
    %c0_77 = arith.constant 0 : index
    %c0_78 = arith.constant 0 : index
    %104 = vector.load %arg36[%c0_77, %c0_78] : memref<16x128xf32, #tpu.memory_space<vmem>>, vector<16x128xf32>
    %cst_79 = arith.constant 1.100000e+00 : f32
    %105 = vector.broadcast %cst_79 : f32 to vector<16x128xf32>
    %106 = arith.mulf %105, %104 : vector<16x128xf32>
    %c0_80 = arith.constant 0 : index
    %c0_81 = arith.constant 0 : index
    %107 = vector.load %arg38[%c0_80, %c0_81] : memref<16x128xf32, #tpu.memory_space<vmem>>, vector<16x128xf32>
    %108 = arith.addf %106, %107 : vector<16x128xf32>
    %109 = arith.truncf %108 : vector<16x128xf32> to vector<16x128xbf16>
    %c0_82 = arith.constant 0 : index
    %c0_83 = arith.constant 0 : index
    %110 = vector.load %arg16[%c0_82, %c0_83] : memref<128x128xbf16, #tpu.memory_space<vmem>>, vector<128x128xbf16>
    %cst_84 = arith.constant dense<0.000000e+00> : vector<16x128xf32>
    %111 = tpu.matmul %109, %110, %cst_84 {dimension_numbers = #tpu.dot_dimension_numbers<[1], [0], [0], [1], [0, 0, 1, 1], [], []>} : vector<16x128xbf16>, vector<128x128xbf16>, vector<16x128xf32> -> vector<16x128xf32>
    %c0_85 = arith.constant 0 : index
    %c0_86 = arith.constant 0 : index
    %112 = vector.load %arg17[%c0_85, %c0_86] : memref<1x128xf32, #tpu.memory_space<vmem>>, vector<1x128xf32>
    %113 = vector.broadcast %112 : vector<1x128xf32> to vector<16x128xf32>
    %114 = arith.addf %111, %113 : vector<16x128xf32>
    %c0_87 = arith.constant 0 : index
    %c0_88 = arith.constant 0 : index
    %115 = vector.load %arg18[%c0_87, %c0_88] : memref<1x128xf32, #tpu.memory_space<vmem>>, vector<1x128xf32>
    %c0_89 = arith.constant 0 : index
    %c0_90 = arith.constant 0 : index
    %116 = vector.load %arg19[%c0_89, %c0_90] : memref<1x128xf32, #tpu.memory_space<vmem>>, vector<1x128xf32>
    %cst_91 = arith.constant dense<0.000000e+00> : vector<128xf32>
    %117 = vector.multi_reduction <add>, %114, %cst_91 [0] : vector<16x128xf32> to vector<128xf32>
    %118 = vector.shape_cast %117 : vector<128xf32> to vector<1x128xf32>
    %cst_92 = arith.constant 1.600000e+01 : f32
    %119 = vector.broadcast %cst_92 : f32 to vector<1x128xf32>
    %120 = arith.divf %118, %119 : vector<1x128xf32>
    %121 = vector.broadcast %120 : vector<1x128xf32> to vector<16x128xf32>
    %122 = arith.subf %114, %121 : vector<16x128xf32>
    %123 = arith.mulf %122, %122 : vector<16x128xf32>
    %cst_93 = arith.constant dense<0.000000e+00> : vector<128xf32>
    %124 = vector.multi_reduction <add>, %123, %cst_93 [0] : vector<16x128xf32> to vector<128xf32>
    %125 = vector.shape_cast %124 : vector<128xf32> to vector<1x128xf32>
    %cst_94 = arith.constant 1.600000e+01 : f32
    %126 = vector.broadcast %cst_94 : f32 to vector<1x128xf32>
    %127 = arith.divf %125, %126 : vector<1x128xf32>
    %128 = vector.broadcast %120 : vector<1x128xf32> to vector<16x128xf32>
    %129 = arith.subf %114, %128 : vector<16x128xf32>
    %cst_95 = arith.constant 9.99999974E-6 : f32
    %130 = vector.broadcast %cst_95 : f32 to vector<1x128xf32>
    %131 = arith.addf %127, %130 : vector<1x128xf32>
    %132 = math.rsqrt %131 : vector<1x128xf32>
    %133 = vector.broadcast %132 : vector<1x128xf32> to vector<16x128xf32>
    %134 = arith.mulf %129, %133 : vector<16x128xf32>
    %135 = vector.broadcast %115 : vector<1x128xf32> to vector<16x128xf32>
    %136 = arith.mulf %134, %135 : vector<16x128xf32>
    %137 = vector.broadcast %116 : vector<1x128xf32> to vector<16x128xf32>
    %138 = arith.addf %136, %137 : vector<16x128xf32>
    %cst_96 = arith.constant 0.000000e+00 : f32
    %139 = vector.broadcast %cst_96 : f32 to vector<16x128xf32>
    %140 = arith.cmpf ogt, %138, %139 : vector<16x128xf32>
    %cst_97 = arith.constant 0.00999999977 : f32
    %141 = vector.broadcast %cst_97 : f32 to vector<16x128xf32>
    %142 = arith.mulf %141, %138 : vector<16x128xf32>
    %143 = arith.select %140, %138, %142 : vector<16x128xi1>, vector<16x128xf32>
    %144 = arith.truncf %143 : vector<16x128xf32> to vector<16x128xbf16>
    %c0_98 = arith.constant 0 : index
    %c0_99 = arith.constant 0 : index
    %145 = vector.load %arg20[%c0_98, %c0_99] : memref<128x128xbf16, #tpu.memory_space<vmem>>, vector<128x128xbf16>
    %cst_100 = arith.constant dense<0.000000e+00> : vector<16x128xf32>
    %146 = tpu.matmul %144, %145, %cst_100 {dimension_numbers = #tpu.dot_dimension_numbers<[1], [0], [0], [1], [0, 0, 1, 1], [], []>} : vector<16x128xbf16>, vector<128x128xbf16>, vector<16x128xf32> -> vector<16x128xf32>
    %c0_101 = arith.constant 0 : index
    %c0_102 = arith.constant 0 : index
    %147 = vector.load %arg21[%c0_101, %c0_102] : memref<1x128xf32, #tpu.memory_space<vmem>>, vector<1x128xf32>
    %148 = vector.broadcast %147 : vector<1x128xf32> to vector<16x128xf32>
    %149 = arith.addf %146, %148 : vector<16x128xf32>
    %cst_103 = arith.constant 0.000000e+00 : f32
    %150 = vector.broadcast %cst_103 : f32 to vector<16x128xf32>
    %151 = arith.cmpf ogt, %149, %150 : vector<16x128xf32>
    %cst_104 = arith.constant 0.00999999977 : f32
    %152 = vector.broadcast %cst_104 : f32 to vector<16x128xf32>
    %153 = arith.mulf %152, %149 : vector<16x128xf32>
    %154 = arith.select %151, %149, %153 : vector<16x128xi1>, vector<16x128xf32>
    %c0_105 = arith.constant 0 : index
    %c0_106 = arith.constant 0 : index
    %155 = vector.load %arg36[%c0_105, %c0_106] : memref<16x128xf32, #tpu.memory_space<vmem>>, vector<16x128xf32>
    tpu.vector_store %arg36[%c0_105, %c0_106], %154 {strides = array<i32>} : memref<16x128xf32, #tpu.memory_space<vmem>>, vector<16x128xf32>,
    %c0_107 = arith.constant 0 : index
    %c0_108 = arith.constant 0 : index
    %156 = vector.load %arg36[%c0_107, %c0_108] : memref<16x128xf32, #tpu.memory_space<vmem>>, vector<16x128xf32>
    %c0_109 = arith.constant 0 : index
    %c0_110 = arith.constant 0 : index
    %157 = vector.load %arg5[%c0_109, %c0_110] : memref<2x16xf32, #tpu.memory_space<vmem>>, vector<2x16xf32>
    %cst_111 = arith.constant dense<0.000000e+00> : vector<2x128xf32>
    %158 = tpu.matmul %157, %156, %cst_111 {dimension_numbers = #tpu.dot_dimension_numbers<[1], [0], [0], [1], [0, 0, 1, 1], [], []>} : vector<2x16xf32>, vector<16x128xf32>, vector<2x128xf32> -> vector<2x128xf32>
    %c0_112 = arith.constant 0 : index
    %c0_113 = arith.constant 0 : index
    %159 = vector.load %arg4[%c0_112, %c0_113] : memref<16x2xf32, #tpu.memory_space<vmem>>, vector<16x2xf32>
    %160 = arith.truncf %158 : vector<2x128xf32> to vector<2x128xbf16>
    %c0_114 = arith.constant 0 : index
    %c0_115 = arith.constant 0 : index
    %161 = vector.load %arg25[%c0_114, %c0_115] : memref<128x128xbf16, #tpu.memory_space<vmem>>, vector<128x128xbf16>
    %cst_116 = arith.constant dense<0.000000e+00> : vector<2x128xf32>
    %162 = tpu.matmul %160, %161, %cst_116 {dimension_numbers = #tpu.dot_dimension_numbers<[1], [0], [0], [1], [0, 0, 1, 1], [], []>} : vector<2x128xbf16>, vector<128x128xbf16>, vector<2x128xf32> -> vector<2x128xf32>
    %cst_117 = arith.constant dense<0.000000e+00> : vector<16x128xf32>
    %163 = tpu.matmul %159, %162, %cst_117 {dimension_numbers = #tpu.dot_dimension_numbers<[1], [0], [0], [1], [0, 0, 1, 1], [], []>} : vector<16x2xf32>, vector<2x128xf32>, vector<16x128xf32> -> vector<16x128xf32>
    %164 = arith.truncf %156 : vector<16x128xf32> to vector<16x128xbf16>
    %c0_118 = arith.constant 0 : index
    %c0_119 = arith.constant 0 : index
    %165 = vector.load %arg24[%c0_118, %c0_119] : memref<128x128xbf16, #tpu.memory_space<vmem>>, vector<128x128xbf16>
    %cst_120 = arith.constant dense<0.000000e+00> : vector<16x128xf32>
    %166 = tpu.matmul %164, %165, %cst_120 {dimension_numbers = #tpu.dot_dimension_numbers<[1], [0], [0], [1], [0, 0, 1, 1], [], []>} : vector<16x128xbf16>, vector<128x128xbf16>, vector<16x128xf32> -> vector<16x128xf32>
    %167 = arith.addf %166, %163 : vector<16x128xf32>
    %c0_121 = arith.constant 0 : index
    %c0_122 = arith.constant 0 : index
    %168 = vector.load %arg26[%c0_121, %c0_122] : memref<1x128xf32, #tpu.memory_space<vmem>>, vector<1x128xf32>
    %169 = vector.broadcast %168 : vector<1x128xf32> to vector<16x128xf32>
    %170 = arith.addf %167, %169 : vector<16x128xf32>
    %c0_123 = arith.constant 0 : index
    %c0_124 = arith.constant 0 : index
    %171 = vector.load %arg27[%c0_123, %c0_124] : memref<1x128xf32, #tpu.memory_space<vmem>>, vector<1x128xf32>
    %c0_125 = arith.constant 0 : index
    %c0_126 = arith.constant 0 : index
    %172 = vector.load %arg28[%c0_125, %c0_126] : memref<1x128xf32, #tpu.memory_space<vmem>>, vector<1x128xf32>
    %cst_127 = arith.constant dense<0.000000e+00> : vector<128xf32>
    %173 = vector.multi_reduction <add>, %170, %cst_127 [0] : vector<16x128xf32> to vector<128xf32>
    %174 = vector.shape_cast %173 : vector<128xf32> to vector<1x128xf32>
    %cst_128 = arith.constant 1.600000e+01 : f32
    %175 = vector.broadcast %cst_128 : f32 to vector<1x128xf32>
    %176 = arith.divf %174, %175 : vector<1x128xf32>
    %177 = vector.broadcast %176 : vector<1x128xf32> to vector<16x128xf32>
    %178 = arith.subf %170, %177 : vector<16x128xf32>
    %179 = arith.mulf %178, %178 : vector<16x128xf32>
    %cst_129 = arith.constant dense<0.000000e+00> : vector<128xf32>
    %180 = vector.multi_reduction <add>, %179, %cst_129 [0] : vector<16x128xf32> to vector<128xf32>
    %181 = vector.shape_cast %180 : vector<128xf32> to vector<1x128xf32>
    %cst_130 = arith.constant 1.600000e+01 : f32
    %182 = vector.broadcast %cst_130 : f32 to vector<1x128xf32>
    %183 = arith.divf %181, %182 : vector<1x128xf32>
    %184 = vector.broadcast %176 : vector<1x128xf32> to vector<16x128xf32>
    %185 = arith.subf %170, %184 : vector<16x128xf32>
    %cst_131 = arith.constant 9.99999974E-6 : f32
    %186 = vector.broadcast %cst_131 : f32 to vector<1x128xf32>
    %187 = arith.addf %183, %186 : vector<1x128xf32>
    %188 = math.rsqrt %187 : vector<1x128xf32>
    %189 = vector.broadcast %188 : vector<1x128xf32> to vector<16x128xf32>
    %190 = arith.mulf %185, %189 : vector<16x128xf32>
    %191 = vector.broadcast %171 : vector<1x128xf32> to vector<16x128xf32>
    %192 = arith.mulf %190, %191 : vector<16x128xf32>
    %193 = vector.broadcast %172 : vector<1x128xf32> to vector<16x128xf32>
    %194 = arith.addf %192, %193 : vector<16x128xf32>
    %cst_132 = arith.constant 0.000000e+00 : f32
    %195 = vector.broadcast %cst_132 : f32 to vector<16x128xf32>
    %196 = arith.cmpf ogt, %194, %195 : vector<16x128xf32>
    %cst_133 = arith.constant 0.00999999977 : f32
    %197 = vector.broadcast %cst_133 : f32 to vector<16x128xf32>
    %198 = arith.mulf %197, %194 : vector<16x128xf32>
    %199 = arith.select %196, %194, %198 : vector<16x128xi1>, vector<16x128xf32>
    %200 = arith.truncf %199 : vector<16x128xf32> to vector<16x128xbf16>
    %c0_134 = arith.constant 0 : index
    %c0_135 = arith.constant 0 : index
    %201 = vector.load %arg29[%c0_134, %c0_135] : memref<128x128xbf16, #tpu.memory_space<vmem>>, vector<128x128xbf16>
    %cst_136 = arith.constant dense<0.000000e+00> : vector<16x128xf32>
    %202 = tpu.matmul %200, %201, %cst_136 {dimension_numbers = #tpu.dot_dimension_numbers<[1], [0], [0], [1], [0, 0, 1, 1], [], []>} : vector<16x128xbf16>, vector<128x128xbf16>, vector<16x128xf32> -> vector<16x128xf32>
    %c0_137 = arith.constant 0 : index
    %c0_138 = arith.constant 0 : index
    %203 = vector.load %arg30[%c0_137, %c0_138] : memref<1x128xf32, #tpu.memory_space<vmem>>, vector<1x128xf32>
    %204 = vector.broadcast %203 : vector<1x128xf32> to vector<16x128xf32>
    %205 = arith.addf %202, %204 : vector<16x128xf32>
    %c0_139 = arith.constant 0 : index
    %c0_140 = arith.constant 0 : index
    %206 = vector.load %arg31[%c0_139, %c0_140] : memref<1x128xf32, #tpu.memory_space<vmem>>, vector<1x128xf32>
    %c0_141 = arith.constant 0 : index
    %c0_142 = arith.constant 0 : index
    %207 = vector.load %arg32[%c0_141, %c0_142] : memref<1x128xf32, #tpu.memory_space<vmem>>, vector<1x128xf32>
    %cst_143 = arith.constant dense<0.000000e+00> : vector<128xf32>
    %208 = vector.multi_reduction <add>, %205, %cst_143 [0] : vector<16x128xf32> to vector<128xf32>
    %209 = vector.shape_cast %208 : vector<128xf32> to vector<1x128xf32>
    %cst_144 = arith.constant 1.600000e+01 : f32
    %210 = vector.broadcast %cst_144 : f32 to vector<1x128xf32>
    %211 = arith.divf %209, %210 : vector<1x128xf32>
    %212 = vector.broadcast %211 : vector<1x128xf32> to vector<16x128xf32>
    %213 = arith.subf %205, %212 : vector<16x128xf32>
    %214 = arith.mulf %213, %213 : vector<16x128xf32>
    %cst_145 = arith.constant dense<0.000000e+00> : vector<128xf32>
    %215 = vector.multi_reduction <add>, %214, %cst_145 [0] : vector<16x128xf32> to vector<128xf32>
    %216 = vector.shape_cast %215 : vector<128xf32> to vector<1x128xf32>
    %cst_146 = arith.constant 1.600000e+01 : f32
    %217 = vector.broadcast %cst_146 : f32 to vector<1x128xf32>
    %218 = arith.divf %216, %217 : vector<1x128xf32>
    %219 = vector.broadcast %211 : vector<1x128xf32> to vector<16x128xf32>
    %220 = arith.subf %205, %219 : vector<16x128xf32>
    %cst_147 = arith.constant 9.99999974E-6 : f32
    %221 = vector.broadcast %cst_147 : f32 to vector<1x128xf32>
    %222 = arith.addf %218, %221 : vector<1x128xf32>
    %223 = math.rsqrt %222 : vector<1x128xf32>
    %224 = vector.broadcast %223 : vector<1x128xf32> to vector<16x128xf32>
    %225 = arith.mulf %220, %224 : vector<16x128xf32>
    %226 = vector.broadcast %206 : vector<1x128xf32> to vector<16x128xf32>
    %227 = arith.mulf %225, %226 : vector<16x128xf32>
    %228 = vector.broadcast %207 : vector<1x128xf32> to vector<16x128xf32>
    %229 = arith.addf %227, %228 : vector<16x128xf32>
    %cst_148 = arith.constant 0.000000e+00 : f32
    %230 = vector.broadcast %cst_148 : f32 to vector<16x128xf32>
    %231 = arith.cmpf ogt, %229, %230 : vector<16x128xf32>
    %cst_149 = arith.constant 0.00999999977 : f32
    %232 = vector.broadcast %cst_149 : f32 to vector<16x128xf32>
    %233 = arith.mulf %232, %229 : vector<16x128xf32>
    %234 = arith.select %231, %229, %233 : vector<16x128xi1>, vector<16x128xf32>
    %c0_150 = arith.constant 0 : index
    %c0_151 = arith.constant 0 : index
    %235 = vector.load %arg33[%c0_150, %c0_151] : memref<1x128xf32, #tpu.memory_space<vmem>>, vector<1x128xf32>
    %236 = vector.broadcast %235 : vector<1x128xf32> to vector<16x128xf32>
    %237 = arith.mulf %234, %236 : vector<16x128xf32>
    %cst_152 = arith.constant dense<0.000000e+00> : vector<16xf32>
    %238 = vector.multi_reduction <add>, %237, %cst_152 [1] : vector<16x128xf32> to vector<16xf32>
    %239 = vector.shape_cast %238 : vector<16xf32> to vector<16x1xf32>
    %c0_153 = arith.constant 0 : index
    %c0_154 = arith.constant 0 : index
    %240 = vector.load %arg34[%c0_153, %c0_154] : memref<1x1xf32, #tpu.memory_space<vmem>>, vector<1x1xf32>
    %241 = vector.broadcast %240 : vector<1x1xf32> to vector<16x1xf32>
    %242 = arith.addf %239, %241 : vector<16x1xf32>
    %c0_155 = arith.constant 0 : index
    %c0_156 = arith.constant 0 : index
    %243 = vector.load %arg35[%c0_155, %c0_156] : memref<16x1xf32, #tpu.memory_space<vmem>>, vector<16x1xf32>
    tpu.vector_store %arg35[%c0_155, %c0_156], %242 {strides = array<i32>} : memref<16x1xf32, #tpu.memory_space<vmem>>, vector<16x1xf32>,
    return
  }
}

</mosaic_0001>

<llo_original>
// kernel: tpu_custom_call.1
$region0: #{tpu_custom_call.1}
  #allocation0 [shape = 'u32[]', space=smem, size = 0x4, offset = 0x4, fixed_abs, tag = 'smem constant byte address 0x4 - core index']
  #allocation1 [shape = 'u32[144,128]{1,0:T(1,128)}', space=vmem, size = 0x12000, scoped, tag = 'internal scratch']
  #allocation2 [shape = 'f32[16,128]{1,0:T(8,128)}', space=vmem, size = 0x2000, scoped, tag = 'scratch operand']
  #allocation3 [shape = 'f32[32,128]{1,0:T(8,128)}', space=vmem, size = 0x4000, scoped, tag = 'scratch operand']
  #allocation4 [shape = 'f32[16,128]{1,0:T(8,128)}', space=vmem, size = 0x2000, scoped, tag = 'scratch operand']
  #allocation5 [shape = 'f32[1,1]{1,0:T(1,128)S(1)}', space=vmem, size = 0x200, scoped, tag = 'scoped memory for tpu_custom_call.1']
  %s0 = inlined_call_operand.smem [shape: u32[36], index: -1, kind: input, shape index: {}]
  %s1 = sld [smem:[%s0]]
  %s2 = scalar_lea.smem %s0, 1
  %s3 = sld [smem:[%s2]]
  %s4 = scalar_lea.smem %s0, 2
  %s5 = sld [smem:[%s4]]
  %s6 = scalar_lea.smem %s0, 3
  %s7 = sld [smem:[%s6]]
  %s8 = scalar_lea.smem %s0, 4
  %s9 = sld [smem:[%s8]]
  %s10 = scalar_lea.smem %s0, 5
  %s11 = sld [smem:[%s10]]
  %s12 = scalar_lea.smem %s0, 6
  %s13 = sld [smem:[%s12]]
  %s14 = scalar_lea.smem %s0, 7
  %s15 = sld [smem:[%s14]]
  %s16 = scalar_lea.smem %s0, 8
  %s17 = sld [smem:[%s16]]
  %s18 = scalar_lea.smem %s0, 9
  %s19 = sld [smem:[%s18]]
  %s20 = scalar_lea.smem %s0, 10
  %s21 = sld [smem:[%s20]]
  %s22 = scalar_lea.smem %s0, 11
  %s23 = sld [smem:[%s22]]
  %s24 = scalar_lea.smem %s0, 12
  %s25 = sld [smem:[%s24]]
  %s26 = scalar_lea.smem %s0, 13
  %s27 = sld [smem:[%s26]]
  %s28 = scalar_lea.smem %s0, 14
  %s29 = sld [smem:[%s28]]
  %s30 = scalar_lea.smem %s0, 15
  %s31 = sld [smem:[%s30]]
  %s32 = scalar_lea.smem %s0, 16
  %s33 = sld [smem:[%s32]]
  %s34 = scalar_lea.smem %s0, 17
  %s35 = sld [smem:[%s34]]
  %s36 = scalar_lea.smem %s0, 18
  %s37 = sld [smem:[%s36]]
  %s38 = scalar_lea.smem %s0, 19
  %s39 = sld [smem:[%s38]]
  %s40 = scalar_lea.smem %s0, 20
  %s41 = sld [smem:[%s40]]
  %s42 = scalar_lea.smem %s0, 21
  %s43 = sld [smem:[%s42]]
  %s44 = scalar_lea.smem %s0, 22
  %s45 = sld [smem:[%s44]]
  %s46 = scalar_lea.smem %s0, 23
  %s47 = sld [smem:[%s46]]
  %s48 = scalar_lea.smem %s0, 24
  %s49 = sld [smem:[%s48]]
  %s50 = scalar_lea.smem %s0, 25
  %s51 = sld [smem:[%s50]]
  %s52 = scalar_lea.smem %s0, 26
  %s53 = sld [smem:[%s52]]
  %s54 = scalar_lea.smem %s0, 27
  %s55 = sld [smem:[%s54]]
  %s56 = scalar_lea.smem %s0, 28
  %s57 = sld [smem:[%s56]]
  %s58 = scalar_lea.smem %s0, 29
  %s59 = sld [smem:[%s58]]
  %s60 = scalar_lea.smem %s0, 30
  %s61 = sld [smem:[%s60]]
  %s62 = scalar_lea.smem %s0, 31
  %s63 = sld [smem:[%s62]]
  %s64 = scalar_lea.smem %s0, 32
  %s65 = sld [smem:[%s64]]
  %s66 = scalar_lea.smem %s0, 33
  %s67 = sld [smem:[%s66]]
  %s68 = scalar_lea.smem %s0, 34
  %s69 = sld [smem:[%s68]]
  %s70 = scalar_lea.smem %s0, 35
  %s71 = sld [smem:[%s70]]
  %s72 = sld [smem:[#allocation0]]
  $region266: #{tpu_custom_call.1} parent=0
    _
  %s74 = ssub.s32 1, %s72
  %s75 = scalar_select 0, %s74, %s72
  %v76 = vstv %s69
  %77 = vst [vmem:[#allocation5] sm:$0x1] %v76
  $region1: #{tpu_custom_call.1} parent=0
    #allocation6 [shape = 'u8[8192]{0}', space=vmem, size = 0x2000, scoped, tag = 'input window, operand 0, single buffered']
    #allocation7 [shape = 's32[1]{0}', space=sflag, size = 0x4, scoped, tag = 'scoped memory for tpu_custom_call.1']
    #allocation8 [shape = 's32[1]{0}', space=sflag, size = 0x4, scoped, tag = 'scoped memory for tpu_custom_call.1']
    #allocation9 [shape = 'u8[512]{0}', space=smem, size = 0x200, scoped, tag = 'input window, operand 1, single buffered']
    #allocation10 [shape = 'u8[512]{0}', space=smem, size = 0x200, scoped, tag = 'input window, operand 2, single buffered']
    #allocation11 [shape = 's32[1]{0}', space=sflag, size = 0x4, scoped, tag = 'scoped memory for tpu_custom_call.1']
    #allocation12 [shape = 'u8[2048]{0}', space=vmem, size = 0x800, scoped, tag = 'input window, operand 6, single buffered']
    #allocation13 [shape = 's32[1]{0}', space=sflag, size = 0x4, scoped, tag = 'scoped memory for tpu_custom_call.1']
    #allocation14 [shape = 'u8[1024]{0}', space=vmem, size = 0x400, scoped, tag = 'input window, operand 7, single buffered']
    #allocation15 [shape = 'u8[512]{0}', space=vmem, size = 0x400, scoped, tag = 'input window, operand 9, single buffered']
    #allocation16 [shape = 's32[1]{0}', space=sflag, size = 0x4, scoped, tag = 'scoped memory for tpu_custom_call.1']
    #allocation17 [shape = 'u8[512]{0}', space=vmem, size = 0x400, scoped, tag = 'input window, operand 10, single buffered']
    #allocation18 [shape = 'u8[512]{0}', space=vmem, size = 0x400, scoped, tag = 'input window, operand 11, single buffered']
    #allocation19 [shape = 's32[1]{0}', space=sflag, size = 0x4, scoped, tag = 'scoped memory for tpu_custom_call.1']
    #allocation20 [shape = 'u8[32768]{0}', space=vmem, size = 0x8000, scoped, tag = 'input window, operand 12, single buffered']
    #allocation21 [shape = 'u8[512]{0}', space=vmem, size = 0x400, scoped, tag = 'input window, operand 13, single buffered']
    #allocation22 [shape = 's32[1]{0}', space=sflag, size = 0x4, scoped, tag = 'scoped memory for tpu_custom_call.1']
    #allocation23 [shape = 'u8[512]{0}', space=vmem, size = 0x400, scoped, tag = 'input window, operand 14, single buffered']
    #allocation24 [shape = 'u8[512]{0}', space=vmem, size = 0x400, scoped, tag = 'input window, operand 15, single buffered']
    #allocation25 [shape = 's32[1]{0}', space=sflag, size = 0x4, scoped, tag = 'scoped memory for tpu_custom_call.1']
    #allocation26 [shape = 'u8[32768]{0}', space=vmem, size = 0x8000, scoped, tag = 'input window, operand 16, single buffered']
    #allocation27 [shape = 'u8[512]{0}', space=vmem, size = 0x400, scoped, tag = 'input window, operand 17, single buffered']
    #allocation28 [shape = 's32[1]{0}', space=sflag, size = 0x4, scoped, tag = 'scoped memory for tpu_custom_call.1']
    #allocation29 [shape = 'u8[512]{0}', space=vmem, size = 0x400, scoped, tag = 'input window, operand 18, single buffered']
    #allocation30 [shape = 'u8[512]{0}', space=vmem, size = 0x400, scoped, tag = 'input window, operand 19, single buffered']
    #allocation31 [shape = 's32[1]{0}', space=sflag, size = 0x4, scoped, tag = 'scoped memory for tpu_custom_call.1']
    #allocation32 [shape = 'u8[32768]{0}', space=vmem, size = 0x8000, scoped, tag = 'input window, operand 20, single buffered']
    #allocation33 [shape = 'u8[512]{0}', space=vmem, size = 0x400, scoped, tag = 'input window, operand 21, single buffered']
    #allocation34 [shape = 's32[1]{0}', space=sflag, size = 0x4, scoped, tag = 'scoped memory for tpu_custom_call.1']
    #allocation35 [shape = 'u8[512]{0}', space=vmem, size = 0x400, scoped, tag = 'input window, operand 22, single buffered']
    #allocation36 [shape = 'u8[512]{0}', space=vmem, size = 0x400, scoped, tag = 'input window, operand 23, single buffered']
    #allocation37 [shape = 's32[1]{0}', space=sflag, size = 0x4, scoped, tag = 'scoped memory for tpu_custom_call.1']
    #allocation38 [shape = 'u8[32768]{0}', space=vmem, size = 0x8000, scoped, tag = 'input window, operand 25, single buffered']
    #allocation39 [shape = 'u8[32768]{0}', space=vmem, size = 0x8000, scoped, tag = 'input window, operand 29, single buffered']
    #allocation40 [shape = 's32[1]{0}', space=sflag, size = 0x4, scoped, tag = 'scoped memory for tpu_custom_call.1']
    %78 = vsyncpa [#allocation7], 0
    %79 = vsyncpa [#allocation8], 0
    %80 = vsyncpa [#allocation11], 0
    %81 = vsyncpa [#allocation13], 0
    %82 = vsyncpa [#allocation16], 0
    %83 = vsyncpa [#allocation19], 0
    %84 = vsyncpa [#allocation22], 0
    %85 = vsyncpa [#allocation25], 0
    %86 = vsyncpa [#allocation28], 0
    %87 = vsyncpa [#allocation31], 0
    %88 = vsyncpa [#allocation34], 0
    %89 = vsyncpa [#allocation37], 0
    %90 = vsyncpa [#allocation40], 0
    // Predicated region
    $region2: #{tpu_custom_call.1} parent=1 // pred_check
      _
    $region3: #{tpu_custom_call.1} parent=1 // pred_check_branch
      %92 = sbr.rel (0) target = $region5
    $region4: #{tpu_custom_call.1} parent=1 // pred_region
      %s94 = ssub.s32 256, 256
      %95 = vsyncadd [#allocation7], %s94
      %s96 = sshll.u32 [#allocation6], 4
      %s97 = int_to_ptr.vmem [resolvable:$true] %s96
      %102 = dma.hbm_to_vmem [thread:$0]  %s1, 256, %s97, [#allocation7], 128, 128, 8
    $region5: #{tpu_custom_call.1} parent=1 // pred_fallthru
      _
    // Predicated region
    $region6: #{tpu_custom_call.1} parent=1 // pred_check
      _
    $region7: #{tpu_custom_call.1} parent=1 // pred_check_branch
      %104 = sbr.rel (0) target = $region9
    $region8: #{tpu_custom_call.1} parent=1 // pred_region
      %s106 = ssub.s32 16, 16
      %107 = vsyncadd [#allocation8], %s106
      %110 = dma.hbm_to_smem %s3, 16, [#allocation9], [#allocation8]
    $region9: #{tpu_custom_call.1} parent=1 // pred_fallthru
      _
    // Predicated region
    $region10: #{tpu_custom_call.1} parent=1 // pred_check
      _
    $region11: #{tpu_custom_call.1} parent=1 // pred_check_branch
      %112 = sbr.rel (0) target = $region13
    $region12: #{tpu_custom_call.1} parent=1 // pred_region
      %s114 = ssub.s32 16, 16
      %115 = vsyncadd [#allocation11], %s114
      %118 = dma.hbm_to_smem %s5, 16, [#allocation10], [#allocation11]
    $region13: #{tpu_custom_call.1} parent=1 // pred_fallthru
      _
    // Predicated region
    $region14: #{tpu_custom_call.1} parent=1 // pred_check
      _
    $region15: #{tpu_custom_call.1} parent=1 // pred_check_branch
      %120 = sbr.rel (0) target = $region17
    $region16: #{tpu_custom_call.1} parent=1 // pred_region
      _
    $region17: #{tpu_custom_call.1} parent=1 // pred_fallthru
      _
    // Predicated region
    $region18: #{tpu_custom_call.1} parent=1 // pred_check
      _
    $region19: #{tpu_custom_call.1} parent=1 // pred_check_branch
      %122 = sbr.rel (0) target = $region21
    $region20: #{tpu_custom_call.1} parent=1 // pred_region
      _
    $region21: #{tpu_custom_call.1} parent=1 // pred_fallthru
      _
    // Predicated region
    $region22: #{tpu_custom_call.1} parent=1 // pred_check
      _
    $region23: #{tpu_custom_call.1} parent=1 // pred_check_branch
      %124 = sbr.rel (0) target = $region25
    $region24: #{tpu_custom_call.1} parent=1 // pred_region
      _
    $region25: #{tpu_custom_call.1} parent=1 // pred_fallthru
      _
    // Predicated region
    $region26: #{tpu_custom_call.1} parent=1 // pred_check
      _
    $region27: #{tpu_custom_call.1} parent=1 // pred_check_branch
      %126 = sbr.rel (0) target = $region29
    $region28: #{tpu_custom_call.1} parent=1 // pred_region
      %s128 = ssub.s32 64, 64
      %129 = vsyncadd [#allocation13], %s128
      %s131 = sshll.u32 [#allocation12], 4
      %s132 = int_to_ptr.vmem [resolvable:$true] %s131
      %134 = dma.hbm_to_vmem [thread:$0]  %s13, 64, %s132, [#allocation13]
    $region29: #{tpu_custom_call.1} parent=1 // pred_fallthru
      _
    // Predicated region
    $region30: #{tpu_custom_call.1} parent=1 // pred_check
      _
    $region31: #{tpu_custom_call.1} parent=1 // pred_check_branch
      %136 = sbr.rel (0) target = $region33
    $region32: #{tpu_custom_call.1} parent=1 // pred_region
      %s138 = ssub.s32 32, 32
      %139 = vsyncadd [#allocation13], %s138
      %s141 = sshll.u32 [#allocation14], 4
      %s142 = int_to_ptr.vmem [resolvable:$true] %s141
      %144 = dma.hbm_to_vmem [thread:$0]  %s15, 32, %s142, [#allocation13]
    $region33: #{tpu_custom_call.1} parent=1 // pred_fallthru
      _
    // Predicated region
    $region34: #{tpu_custom_call.1} parent=1 // pred_check
      _
    $region35: #{tpu_custom_call.1} parent=1 // pred_check_branch
      %146 = sbr.rel (0) target = $region37
    $region36: #{tpu_custom_call.1} parent=1 // pred_region
      _
    $region37: #{tpu_custom_call.1} parent=1 // pred_fallthru
      _
    // Predicated region
    $region38: #{tpu_custom_call.1} parent=1 // pred_check
      _
    $region39: #{tpu_custom_call.1} parent=1 // pred_check_branch
      %148 = sbr.rel (0) target = $region41
    $region40: #{tpu_custom_call.1} parent=1 // pred_region
      %s150 = ssub.s32 16, 16
      %151 = vsyncadd [#allocation16], %s150
      %s153 = sshll.u32 [#allocation15], 4
      %s154 = int_to_ptr.vmem [resolvable:$true] %s153
      %156 = dma.hbm_to_vmem [thread:$0]  %s19, 16, %s154, [#allocation16]
    $region41: #{tpu_custom_call.1} parent=1 // pred_fallthru
      _
    // Predicated region
    $region42: #{tpu_custom_call.1} parent=1 // pred_check
      _
    $region43: #{tpu_custom_call.1} parent=1 // pred_check_branch
      %158 = sbr.rel (0) target = $region45
    $region44: #{tpu_custom_call.1} parent=1 // pred_region
      %s160 = ssub.s32 16, 16
      %161 = vsyncadd [#allocation16], %s160
      %s163 = sshll.u32 [#allocation17], 4
      %s164 = int_to_ptr.vmem [resolvable:$true] %s163
      %166 = dma.hbm_to_vmem [thread:$0]  %s21, 16, %s164, [#allocation16]
    $region45: #{tpu_custom_call.1} parent=1 // pred_fallthru
      _
    // Predicated region
    $region46: #{tpu_custom_call.1} parent=1 // pred_check
      _
    $region47: #{tpu_custom_call.1} parent=1 // pred_check_branch
      %168 = sbr.rel (0) target = $region49
    $region48: #{tpu_custom_call.1} parent=1 // pred_region
      %s170 = ssub.s32 16, 16
      %171 = vsyncadd [#allocation19], %s170
      %s173 = sshll.u32 [#allocation18], 4
      %s174 = int_to_ptr.vmem [resolvable:$true] %s173
      %176 = dma.hbm_to_vmem [thread:$0]  %s23, 16, %s174, [#allocation19]
    $region49: #{tpu_custom_call.1} parent=1 // pred_fallthru
      _
    // Predicated region
    $region50: #{tpu_custom_call.1} parent=1 // pred_check
      _
    $region51: #{tpu_custom_call.1} parent=1 // pred_check_branch
      %178 = sbr.rel (0) target = $region53
    $region52: #{tpu_custom_call.1} parent=1 // pred_region
      %s180 = ssub.s32 1024, 1024
      %181 = vsyncadd [#allocation19], %s180
      %s182 = sshll.u32 [#allocation20], 4
      %s183 = int_to_ptr.vmem [resolvable:$true] %s182
      %188 = dma.hbm_to_vmem [thread:$0]  %s25, 1024, %s183, [#allocation19], 64, 64, 4
    $region53: #{tpu_custom_call.1} parent=1 // pred_fallthru
      _
    // Predicated region
    $region54: #{tpu_custom_call.1} parent=1 // pred_check
      _
    $region55: #{tpu_custom_call.1} parent=1 // pred_check_branch
      %190 = sbr.rel (0) target = $region57
    $region56: #{tpu_custom_call.1} parent=1 // pred_region
      %s192 = ssub.s32 16, 16
      %193 = vsyncadd [#allocation22], %s192
      %s195 = sshll.u32 [#allocation21], 4
      %s196 = int_to_ptr.vmem [resolvable:$true] %s195
      %198 = dma.hbm_to_vmem [thread:$0]  %s27, 16, %s196, [#allocation22]
    $region57: #{tpu_custom_call.1} parent=1 // pred_fallthru
      _
    // Predicated region
    $region58: #{tpu_custom_call.1} parent=1 // pred_check
      _
    $region59: #{tpu_custom_call.1} parent=1 // pred_check_branch
      %200 = sbr.rel (0) target = $region61
    $region60: #{tpu_custom_call.1} parent=1 // pred_region
      %s202 = ssub.s32 16, 16
      %203 = vsyncadd [#allocation22], %s202
      %s205 = sshll.u32 [#allocation23], 4
      %s206 = int_to_ptr.vmem [resolvable:$true] %s205
      %208 = dma.hbm_to_vmem [thread:$0]  %s29, 16, %s206, [#allocation22]
    $region61: #{tpu_custom_call.1} parent=1 // pred_fallthru
      _
    // Predicated region
    $region62: #{tpu_custom_call.1} parent=1 // pred_check
      _
    $region63: #{tpu_custom_call.1} parent=1 // pred_check_branch
      %210 = sbr.rel (0) target = $region65
    $region64: #{tpu_custom_call.1} parent=1 // pred_region
      %s212 = ssub.s32 16, 16
      %213 = vsyncadd [#allocation25], %s212
      %s215 = sshll.u32 [#allocation24], 4
      %s216 = int_to_ptr.vmem [resolvable:$true] %s215
      %218 = dma.hbm_to_vmem [thread:$0]  %s31, 16, %s216, [#allocation25]
    $region65: #{tpu_custom_call.1} parent=1 // pred_fallthru
      _
    // Predicated region
    $region66: #{tpu_custom_call.1} parent=1 // pred_check
      _
    $region67: #{tpu_custom_call.1} parent=1 // pred_check_branch
      %220 = sbr.rel (0) target = $region69
    $region68: #{tpu_custom_call.1} parent=1 // pred_region
      %s222 = ssub.s32 1024, 1024
      %223 = vsyncadd [#allocation25], %s222
      %s224 = sshll.u32 [#allocation26], 4
      %s225 = int_to_ptr.vmem [resolvable:$true] %s224
      %230 = dma.hbm_to_vmem [thread:$0]  %s33, 1024, %s225, [#allocation25], 64, 64, 4
    $region69: #{tpu_custom_call.1} parent=1 // pred_fallthru
      _
    // Predicated region
    $region70: #{tpu_custom_call.1} parent=1 // pred_check
      _
    $region71: #{tpu_custom_call.1} parent=1 // pred_check_branch
      %232 = sbr.rel (0) target = $region73
    $region72: #{tpu_custom_call.1} parent=1 // pred_region
      %s234 = ssub.s32 16, 16
      %235 = vsyncadd [#allocation28], %s234
      %s237 = sshll.u32 [#allocation27], 4
      %s238 = int_to_ptr.vmem [resolvable:$true] %s237
      %240 = dma.hbm_to_vmem [thread:$0]  %s35, 16, %s238, [#allocation28]
    $region73: #{tpu_custom_call.1} parent=1 // pred_fallthru
      _
    // Predicated region
    $region74: #{tpu_custom_call.1} parent=1 // pred_check
      _
    $region75: #{tpu_custom_call.1} parent=1 // pred_check_branch
      %242 = sbr.rel (0) target = $region77
    $region76: #{tpu_custom_call.1} parent=1 // pred_region
      %s244 = ssub.s32 16, 16
      %245 = vsyncadd [#allocation28], %s244
      %s247 = sshll.u32 [#allocation29], 4
      %s248 = int_to_ptr.vmem [resolvable:$true] %s247
      %250 = dma.hbm_to_vmem [thread:$0]  %s37, 16, %s248, [#allocation28]
    $region77: #{tpu_custom_call.1} parent=1 // pred_fallthru
      _
    // Predicated region
    $region78: #{tpu_custom_call.1} parent=1 // pred_check
      _
    $region79: #{tpu_custom_call.1} parent=1 // pred_check_branch
      %252 = sbr.rel (0) target = $region81
    $region80: #{tpu_custom_call.1} parent=1 // pred_region
      %s254 = ssub.s32 16, 16
      %255 = vsyncadd [#allocation31], %s254
      %s257 = sshll.u32 [#allocation30], 4
      %s258 = int_to_ptr.vmem [resolvable:$true] %s257
      %260 = dma.hbm_to_vmem [thread:$0]  %s39, 16, %s258, [#allocation31]
    $region81: #{tpu_custom_call.1} parent=1 // pred_fallthru
      _
    // Predicated region
    $region82: #{tpu_custom_call.1} parent=1 // pred_check
      _
    $region83: #{tpu_custom_call.1} parent=1 // pred_check_branch
      %262 = sbr.rel (0) target = $region85
    $region84: #{tpu_custom_call.1} parent=1 // pred_region
      %s264 = ssub.s32 1024, 1024
      %265 = vsyncadd [#allocation31], %s264
      %s266 = sshll.u32 [#allocation32], 4
      %s267 = int_to_ptr.vmem [resolvable:$true] %s266
      %272 = dma.hbm_to_vmem [thread:$0]  %s41, 1024, %s267, [#allocation31], 64, 64, 4
    $region85: #{tpu_custom_call.1} parent=1 // pred_fallthru
      _
    // Predicated region
    $region86: #{tpu_custom_call.1} parent=1 // pred_check
      _
    $region87: #{tpu_custom_call.1} parent=1 // pred_check_branch
      %274 = sbr.rel (0) target = $region89
    $region88: #{tpu_custom_call.1} parent=1 // pred_region
      %s276 = ssub.s32 16, 16
      %277 = vsyncadd [#allocation34], %s276
      %s279 = sshll.u32 [#allocation33], 4
      %s280 = int_to_ptr.vmem [resolvable:$true] %s279
      %282 = dma.hbm_to_vmem [thread:$0]  %s43, 16, %s280, [#allocation34]
    $region89: #{tpu_custom_call.1} parent=1 // pred_fallthru
      _
    // Predicated region
    $region90: #{tpu_custom_call.1} parent=1 // pred_check
      _
    $region91: #{tpu_custom_call.1} parent=1 // pred_check_branch
      %284 = sbr.rel (0) target = $region93
    $region92: #{tpu_custom_call.1} parent=1 // pred_region
      %s286 = ssub.s32 16, 16
      %287 = vsyncadd [#allocation34], %s286
      %s289 = sshll.u32 [#allocation35], 4
      %s290 = int_to_ptr.vmem [resolvable:$true] %s289
      %292 = dma.hbm_to_vmem [thread:$0]  %s45, 16, %s290, [#allocation34]
    $region93: #{tpu_custom_call.1} parent=1 // pred_fallthru
      _
    // Predicated region
    $region94: #{tpu_custom_call.1} parent=1 // pred_check
      _
    $region95: #{tpu_custom_call.1} parent=1 // pred_check_branch
      %294 = sbr.rel (0) target = $region97
    $region96: #{tpu_custom_call.1} parent=1 // pred_region
      %s296 = ssub.s32 16, 16
      %297 = vsyncadd [#allocation37], %s296
      %s299 = sshll.u32 [#allocation36], 4
      %s300 = int_to_ptr.vmem [resolvable:$true] %s299
      %302 = dma.hbm_to_vmem [thread:$0]  %s47, 16, %s300, [#allocation37]
    $region97: #{tpu_custom_call.1} parent=1 // pred_fallthru
      _
    // Predicated region
    $region98: #{tpu_custom_call.1} parent=1 // pred_check
      _
    $region99: #{tpu_custom_call.1} parent=1 // pred_check_branch
      %304 = sbr.rel (0) target = $region101
    $region100: #{tpu_custom_call.1} parent=1 // pred_region
      _
    $region101: #{tpu_custom_call.1} parent=1 // pred_fallthru
      _
    // Predicated region
    $region102: #{tpu_custom_call.1} parent=1 // pred_check
      _
    $region103: #{tpu_custom_call.1} parent=1 // pred_check_branch
      %306 = sbr.rel (0) target = $region105
    $region104: #{tpu_custom_call.1} parent=1 // pred_region
      %s308 = ssub.s32 1024, 1024
      %309 = vsyncadd [#allocation37], %s308
      %s310 = sshll.u32 [#allocation38], 4
      %s311 = int_to_ptr.vmem [resolvable:$true] %s310
      %316 = dma.hbm_to_vmem [thread:$0]  %s51, 1024, %s311, [#allocation37], 64, 64, 4
    $region105: #{tpu_custom_call.1} parent=1 // pred_fallthru
      _
    // Predicated region
    $region106: #{tpu_custom_call.1} parent=1 // pred_check
      _
    $region107: #{tpu_custom_call.1} parent=1 // pred_check_branch
      %318 = sbr.rel (0) target = $region109
    $region108: #{tpu_custom_call.1} parent=1 // pred_region
      _
    $region109: #{tpu_custom_call.1} parent=1 // pred_fallthru
      _
    // Predicated region
    $region110: #{tpu_custom_call.1} parent=1 // pred_check
      _
    $region111: #{tpu_custom_call.1} parent=1 // pred_check_branch
      %320 = sbr.rel (0) target = $region113
    $region112: #{tpu_custom_call.1} parent=1 // pred_region
      _
    $region113: #{tpu_custom_call.1} parent=1 // pred_fallthru
      _
    // Predicated region
    $region114: #{tpu_custom_call.1} parent=1 // pred_check
      _
    $region115: #{tpu_custom_call.1} parent=1 // pred_check_branch
      %322 = sbr.rel (0) target = $region117
    $region116: #{tpu_custom_call.1} parent=1 // pred_region
      _
    $region117: #{tpu_custom_call.1} parent=1 // pred_fallthru
      _
    // Predicated region
    $region118: #{tpu_custom_call.1} parent=1 // pred_check
      _
    $region119: #{tpu_custom_call.1} parent=1 // pred_check_branch
      %324 = sbr.rel (0) target = $region121
    $region120: #{tpu_custom_call.1} parent=1 // pred_region
      %s326 = ssub.s32 1024, 1024
      %327 = vsyncadd [#allocation40], %s326
      %s328 = sshll.u32 [#allocation39], 4
      %s329 = int_to_ptr.vmem [resolvable:$true] %s328
      %334 = dma.hbm_to_vmem [thread:$0]  %s59, 1024, %s329, [#allocation40], 64, 64, 4
    $region121: #{tpu_custom_call.1} parent=1 // pred_fallthru
      _
    // Predicated region
    $region122: #{tpu_custom_call.1} parent=1 // pred_check
      _
    $region123: #{tpu_custom_call.1} parent=1 // pred_check_branch
      %336 = sbr.rel (0) target = $region125
    $region124: #{tpu_custom_call.1} parent=1 // pred_region
      _
    $region125: #{tpu_custom_call.1} parent=1 // pred_fallthru
      _
    // Predicated region
    $region126: #{tpu_custom_call.1} parent=1 // pred_check
      _
    $region127: #{tpu_custom_call.1} parent=1 // pred_check_branch
      %338 = sbr.rel (0) target = $region129
    $region128: #{tpu_custom_call.1} parent=1 // pred_region
      _
    $region129: #{tpu_custom_call.1} parent=1 // pred_fallthru
      _
    // Predicated region
    $region130: #{tpu_custom_call.1} parent=1 // pred_check
      _
    $region131: #{tpu_custom_call.1} parent=1 // pred_check_branch
      %340 = sbr.rel (0) target = $region133
    $region132: #{tpu_custom_call.1} parent=1 // pred_region
      _
    $region133: #{tpu_custom_call.1} parent=1 // pred_fallthru
      _
    // Predicated region
    $region134: #{tpu_custom_call.1} parent=1 // pred_check
      _
    $region135: #{tpu_custom_call.1} parent=1 // pred_check_branch
      %342 = sbr.rel (0) target = $region137
    $region136: #{tpu_custom_call.1} parent=1 // pred_region
      _
    $region137: #{tpu_custom_call.1} parent=1 // pred_fallthru
      _
    // Predicated region
    $region138: #{tpu_custom_call.1} parent=1 // pred_check
      _
    $region139: #{tpu_custom_call.1} parent=1 // pred_check_branch
      %344 = sbr.rel (0) target = $region141
    $region140: #{tpu_custom_call.1} parent=1 // pred_region
      _
    $region141: #{tpu_custom_call.1} parent=1 // pred_fallthru
      _
    // Predicated region
    $region142: #{tpu_custom_call.1} parent=1 // pred_check
      _
    $region143: #{tpu_custom_call.1} parent=1 // pred_check_branch
      %346 = sbr.rel (0) target = $region145
    $region144: #{tpu_custom_call.1} parent=1 // pred_region
      %347 = dma.done [#allocation7], 256
    $region145: #{tpu_custom_call.1} parent=1 // pred_fallthru
      _
    // Predicated region
    $region146: #{tpu_custom_call.1} parent=1 // pred_check
      _
    $region147: #{tpu_custom_call.1} parent=1 // pred_check_branch
      %349 = sbr.rel (0) target = $region149
    $region148: #{tpu_custom_call.1} parent=1 // pred_region
      %350 = dma.done [#allocation8], 16
    $region149: #{tpu_custom_call.1} parent=1 // pred_fallthru
      _
    // Predicated region
    $region150: #{tpu_custom_call.1} parent=1 // pred_check
      _
    $region151: #{tpu_custom_call.1} parent=1 // pred_check_branch
      %352 = sbr.rel (0) target = $region153
    $region152: #{tpu_custom_call.1} parent=1 // pred_region
      %353 = dma.done [#allocation11], 16
    $region153: #{tpu_custom_call.1} parent=1 // pred_fallthru
      _
    // Predicated region
    $region154: #{tpu_custom_call.1} parent=1 // pred_check
      _
    $region155: #{tpu_custom_call.1} parent=1 // pred_check_branch
      %355 = sbr.rel (0) target = $region157
    $region156: #{tpu_custom_call.1} parent=1 // pred_region
      %356 = dma.done [#allocation13], 64
    $region157: #{tpu_custom_call.1} parent=1 // pred_fallthru
      _
    // Predicated region
    $region158: #{tpu_custom_call.1} parent=1 // pred_check
      _
    $region159: #{tpu_custom_call.1} parent=1 // pred_check_branch
      %358 = sbr.rel (0) target = $region161
    $region160: #{tpu_custom_call.1} parent=1 // pred_region
      %359 = dma.done [#allocation13], 32
    $region161: #{tpu_custom_call.1} parent=1 // pred_fallthru
      _
    // Predicated region
    $region162: #{tpu_custom_call.1} parent=1 // pred_check
      _
    $region163: #{tpu_custom_call.1} parent=1 // pred_check_branch
      %361 = sbr.rel (0) target = $region165
    $region164: #{tpu_custom_call.1} parent=1 // pred_region
      %362 = dma.done [#allocation16], 16
    $region165: #{tpu_custom_call.1} parent=1 // pred_fallthru
      _
    // Predicated region
    $region166: #{tpu_custom_call.1} parent=1 // pred_check
      _
    $region167: #{tpu_custom_call.1} parent=1 // pred_check_branch
      %364 = sbr.rel (0) target = $region169
    $region168: #{tpu_custom_call.1} parent=1 // pred_region
      %365 = dma.done [#allocation16], 16
    $region169: #{tpu_custom_call.1} parent=1 // pred_fallthru
      _
    // Predicated region
    $region170: #{tpu_custom_call.1} parent=1 // pred_check
      _
    $region171: #{tpu_custom_call.1} parent=1 // pred_check_branch
      %367 = sbr.rel (0) target = $region173
    $region172: #{tpu_custom_call.1} parent=1 // pred_region
      %368 = dma.done [#allocation19], 16
    $region173: #{tpu_custom_call.1} parent=1 // pred_fallthru
      _
    // Predicated region
    $region174: #{tpu_custom_call.1} parent=1 // pred_check
      _
    $region175: #{tpu_custom_call.1} parent=1 // pred_check_branch
      %370 = sbr.rel (0) target = $region177
    $region176: #{tpu_custom_call.1} parent=1 // pred_region
      %371 = dma.done [#allocation19], 1024
    $region177: #{tpu_custom_call.1} parent=1 // pred_fallthru
      _
    // Predicated region
    $region178: #{tpu_custom_call.1} parent=1 // pred_check
      _
    $region179: #{tpu_custom_call.1} parent=1 // pred_check_branch
      %373 = sbr.rel (0) target = $region181
    $region180: #{tpu_custom_call.1} parent=1 // pred_region
      %374 = dma.done [#allocation22], 16
    $region181: #{tpu_custom_call.1} parent=1 // pred_fallthru
      _
    // Predicated region
    $region182: #{tpu_custom_call.1} parent=1 // pred_check
      _
    $region183: #{tpu_custom_call.1} parent=1 // pred_check_branch
      %376 = sbr.rel (0) target = $region185
    $region184: #{tpu_custom_call.1} parent=1 // pred_region
      %377 = dma.done [#allocation22], 16
    $region185: #{tpu_custom_call.1} parent=1 // pred_fallthru
      _
    // Predicated region
    $region186: #{tpu_custom_call.1} parent=1 // pred_check
      _
    $region187: #{tpu_custom_call.1} parent=1 // pred_check_branch
      %379 = sbr.rel (0) target = $region189
    $region188: #{tpu_custom_call.1} parent=1 // pred_region
      %380 = dma.done [#allocation25], 16
    $region189: #{tpu_custom_call.1} parent=1 // pred_fallthru
      _
    // Predicated region
    $region190: #{tpu_custom_call.1} parent=1 // pred_check
      _
    $region191: #{tpu_custom_call.1} parent=1 // pred_check_branch
      %382 = sbr.rel (0) target = $region193
    $region192: #{tpu_custom_call.1} parent=1 // pred_region
      %383 = dma.done [#allocation25], 1024
    $region193: #{tpu_custom_call.1} parent=1 // pred_fallthru
      _
    // Predicated region
    $region194: #{tpu_custom_call.1} parent=1 // pred_check
      _
    $region195: #{tpu_custom_call.1} parent=1 // pred_check_branch
      %385 = sbr.rel (0) target = $region197
    $region196: #{tpu_custom_call.1} parent=1 // pred_region
      %386 = dma.done [#allocation28], 16
    $region197: #{tpu_custom_call.1} parent=1 // pred_fallthru
      _
    // Predicated region
    $region198: #{tpu_custom_call.1} parent=1 // pred_check
      _
    $region199: #{tpu_custom_call.1} parent=1 // pred_check_branch
      %388 = sbr.rel (0) target = $region201
    $region200: #{tpu_custom_call.1} parent=1 // pred_region
      %389 = dma.done [#allocation28], 16
    $region201: #{tpu_custom_call.1} parent=1 // pred_fallthru
      _
    // Predicated region
    $region202: #{tpu_custom_call.1} parent=1 // pred_check
      _
    $region203: #{tpu_custom_call.1} parent=1 // pred_check_branch
      %391 = sbr.rel (0) target = $region205
    $region204: #{tpu_custom_call.1} parent=1 // pred_region
      %392 = dma.done [#allocation31], 16
    $region205: #{tpu_custom_call.1} parent=1 // pred_fallthru
      _
    // Predicated region
    $region206: #{tpu_custom_call.1} parent=1 // pred_check
      _
    $region207: #{tpu_custom_call.1} parent=1 // pred_check_branch
      %394 = sbr.rel (0) target = $region209
    $region208: #{tpu_custom_call.1} parent=1 // pred_region
      %395 = dma.done [#allocation31], 1024
    $region209: #{tpu_custom_call.1} parent=1 // pred_fallthru
      _
    // Predicated region
    $region210: #{tpu_custom_call.1} parent=1 // pred_check
      _
    $region211: #{tpu_custom_call.1} parent=1 // pred_check_branch
      %397 = sbr.rel (0) target = $region213
    $region212: #{tpu_custom_call.1} parent=1 // pred_region
      %398 = dma.done [#allocation34], 16
    $region213: #{tpu_custom_call.1} parent=1 // pred_fallthru
      _
    // Predicated region
    $region214: #{tpu_custom_call.1} parent=1 // pred_check
      _
    $region215: #{tpu_custom_call.1} parent=1 // pred_check_branch
      %400 = sbr.rel (0) target = $region217
    $region216: #{tpu_custom_call.1} parent=1 // pred_region
      %401 = dma.done [#allocation34], 16
    $region217: #{tpu_custom_call.1} parent=1 // pred_fallthru
      _
    // Predicated region
    $region218: #{tpu_custom_call.1} parent=1 // pred_check
      _
    $region219: #{tpu_custom_call.1} parent=1 // pred_check_branch
      %403 = sbr.rel (0) target = $region221
    $region220: #{tpu_custom_call.1} parent=1 // pred_region
      %404 = dma.done [#allocation37], 16
    $region221: #{tpu_custom_call.1} parent=1 // pred_fallthru
      _
    // Predicated region
    $region222: #{tpu_custom_call.1} parent=1 // pred_check
      _
    $region223: #{tpu_custom_call.1} parent=1 // pred_check_branch
      %406 = sbr.rel (0) target = $region225
    $region224: #{tpu_custom_call.1} parent=1 // pred_region
      %407 = dma.done [#allocation37], 1024
    $region225: #{tpu_custom_call.1} parent=1 // pred_fallthru
      _
    // Predicated region
    $region226: #{tpu_custom_call.1} parent=1 // pred_check
      _
    $region227: #{tpu_custom_call.1} parent=1 // pred_check_branch
      %409 = sbr.rel (0) target = $region229
    $region228: #{tpu_custom_call.1} parent=1 // pred_region
      %410 = dma.done [#allocation40], 1024
    $region229: #{tpu_custom_call.1} parent=1 // pred_fallthru
      _
    %411 = sfence
    %v413 = vld [vmem:[#allocation6] sm:$0xff]
    %v414 = vld [vmem:[#allocation6 + $0x8] sm:$0xff]
    %415 = vst [vmem:[#allocation2] sm:$0xff] %v413
    %416 = vst [vmem:[#allocation2 + $0x8] sm:$0xff] %v414
    %v417 = vld [vmem:[%s7] sm:$0xf]
    %v418 = vld [vmem:[%s7 + $0x4] sm:$0xf]
    %v419 = vld [vmem:[%s7 + $0x8] sm:$0xf]
    %v420 = vld [vmem:[%s7 + $0xc] sm:$0xf]
    %v421 = vld [vmem:[#allocation12] sm:$0xf]
    %v422 = vld [vmem:[#allocation14] sm:$0x3]
    %v424 = vlaneseq
    %v425 = vshrl.u32 %v424, 7
    %v426 = vsub.s32 0, %v425
    %v427 = vrot.slane %v422, %v426
    %v428 = vlaneseq
    %v429 = vshrl.u32 %v428, 7
    %v430 = vsub.s32 1, %v429
    %v431 = vrot.slane %v422, %v430
    %v438 = vunpack.c.l.b16 %v417
    %v439 = vunpack.c.l.b16 %v418
    %v440 = vunpack.c.l.b16 %v419
    %v441 = vunpack.c.l.b16 %v420
    %v442 = vpack.c.b16 %v439, %v438
    %v443 = vpack.c.b16 %v441, %v440
    %v446 = vunpack.c.l.s4 1983009808
    %v447 = vunpack.c.0.s8 %v446
    %v448 = vlaneseq
    %v449 = vshrl.u32 %v448, 7
    %v450 = vsub.s32 %v447, %v449
    %v451 = vrot.slane %v421, %v450
    %v452 = vcombine.high %v451, %v451
    %vm453 = vcmask 31744
    %v455 = vsel %vm453, %v442, 0
    %v458 = vsel %vm453, %v443, 0
    %vm460 = vcmask 1041408
    %v462 = vsel %vm460, %v451, 0
    %v465 = vsel %vm460, %v452, 0
    %467 = vmatprep.subr.bf16.mxu0 %v465
    %468 = vmatpush1.bf16.msra.mxu0 %v462
    %469 = vmatprep.subr.bf16.mxu0 0
    %470 = vmatpush1.bf16.msra.mxu0 0
    %471 = vmatprep.subr.bf16.mxu0 0
    %472 = vmatpush1.bf16.msra.mxu0 0
    %473 = vmatprep.subr.bf16.mxu0 0
    %474 = vmatpush1.bf16.msra.mxu0 0
    %475 = vmatprep.subr.bf16.mxu0 0
    %476 = vmatpush1.bf16.msra.mxu0 0
    %477 = vmatprep.subr.bf16.mxu0 0
    %478 = vmatpush1.bf16.msra.mxu0 0
    %479 = vmatprep.subr.bf16.mxu0 0
    %480 = vmatpush1.bf16.msra.mxu0 0
    %481 = vmatprep.subr.bf16.mxu0 0
    %482 = vmatpush1.bf16.msra.mxu0 0
    %483 = vmatprep.subr.bf16.mxu0 0
    %484 = vmatpush1.bf16.msra.mxu0 0
    %485 = vmatprep.subr.bf16.mxu0 0
    %486 = vmatpush1.bf16.msra.mxu0 0
    %487 = vmatprep.subr.bf16.mxu0 0
    %488 = vmatpush1.bf16.msra.mxu0 0
    %489 = vmatprep.subr.bf16.mxu0 0
    %490 = vmatpush1.bf16.msra.mxu0 0
    %491 = vmatprep.subr.bf16.mxu0 0
    %492 = vmatpush1.bf16.msra.mxu0 0
    %493 = vmatprep.subr.bf16.mxu0 0
    %494 = vmatpush1.bf16.msra.mxu0 0
    %495 = vmatprep.subr.bf16.mxu0 0
    %496 = vmatpush1.bf16.msra.mxu0 0
    %497 = vmatprep.subr.bf16.mxu0 0
    %498 = vmatpush1.bf16.msra.mxu0 0
    %499 = vmatprep.mubr.bf16.mxu0 0
    %500 = vmatmul.mubr.bf16.gmra.mrb[0].mxu0 %v455
    %v501 = vpop.f32.mrb[0].mxu0
    %v502 = vadd.f32 %v427, %v501
    %v503 = vpop.f32.mrb[0].mxu0
    %v504 = vadd.f32 %v431, %v503
    %v505 = vpop.f32.mrb[0].mxu0
    %v506 = vadd.f32 %v427, %v505
    %v507 = vpop.f32.mrb[0].mxu0
    %v508 = vadd.f32 %v431, %v507
    %509 = vmatprep.mubr.bf16.mxu0 0
    %510 = vmatmul.mubr.bf16.gmra.mrb[0].mxu0 %v458
    %v511 = vpop.f32.mrb[0].mxu0
    %v512 = vadd.f32 %v427, %v511
    %v513 = vpop.f32.mrb[0].mxu0
    %v514 = vadd.f32 %v431, %v513
    %v515 = vpop.f32.mrb[0].mxu0
    %v516 = vadd.f32 %v427, %v515
    %v517 = vpop.f32.mrb[0].mxu0
    %v518 = vadd.f32 %v431, %v517
    %519 = vdwg.mxu0
    loop: start=0, step=1, limit=32
    $region230: #{tpu_custom_call.1} parent=1 // loop_pre_header
      _
    $region231: #{tpu_custom_call.1} parent=1 // loop_header
      %s521 = sphi 0, %s525
      %p522 = scmp.ge.s32.totalorder %s521, 32
    $region232: #{tpu_custom_call.1} parent=1 // loop_header_branch
      %524 = sbr.rel (%p522) target = $region236
    $region233: #{tpu_custom_call.1} parent=1 // loop_body
      %s526 = sld [smem:[#allocation9 + %s521]]
      %s527 = scalar_lea.vmem [#allocation2], %s526
      %v528 = vld [vmem:[%s527] sm:$0x1]
      %s529 = scalar_lea.vmem [#allocation3], %s521
      %530 = vst [vmem:[%s529] sm:$0x1] %v528
    $region234: #{tpu_custom_call.1} parent=1 // loop_footer
      %s525 = sadd.s32 1, %s521
    $region235: #{tpu_custom_call.1} parent=1 // loop_footer_branch
      %520 = sbr.rel target = $region231
    $region236: #{tpu_custom_call.1} parent=1 // loop_exit
      _
    %v531 = vld [vmem:[#allocation3] sm:$0xff]
    %v532 = vld [vmem:[#allocation3 + $0x8] sm:$0xff]
    %v533 = vld [vmem:[#allocation3 + $0x10] sm:$0xff]
    %v534 = vld [vmem:[#allocation3 + $0x18] sm:$0xff]
    %v535 = vadd.f32 %v531, %v502
    %v536 = vadd.f32 %v532, %v506
    %v537 = vadd.f32 %v533, %v512
    %v538 = vadd.f32 %v534, %v516
    %v539 = vmax.f32 %v535, 0.0
    %v540 = vmax.f32 %v536, 0.0
    %v541 = vmax.f32 %v537, 0.0
    %v542 = vmax.f32 %v538, 0.0
    %543 = vst [vmem:[#allocation3] sm:$0xff] %v539
    %544 = vst [vmem:[#allocation3 + $0x8] sm:$0xff] %v540
    %545 = vst [vmem:[#allocation3 + $0x10] sm:$0xff] %v541
    %546 = vst [vmem:[#allocation3 + $0x18] sm:$0xff] %v542
    %547 = vst [vmem:[#allocation4] sm:$0xff] 0.0
    %548 = vst [vmem:[#allocation4 + $0x8] sm:$0xff] 0.0
    loop: start=0, step=1, limit=32
    $region237: #{tpu_custom_call.1} parent=1 // loop_pre_header
      _
    $region238: #{tpu_custom_call.1} parent=1 // loop_header
      %s550 = sphi 0, %s554
      %p551 = scmp.ge.s32.totalorder %s550, 32
    $region239: #{tpu_custom_call.1} parent=1 // loop_header_branch
      %553 = sbr.rel (%p551) target = $region243
    $region240: #{tpu_custom_call.1} parent=1 // loop_body
      %s555 = sld [smem:[#allocation10 + %s550]]
      %s556 = scalar_lea.vmem [#allocation4], %s555
      %v557 = vld [vmem:[%s556] sm:$0x1]
      %s558 = scalar_lea.vmem [#allocation3], %s550
      %v559 = vld [vmem:[%s558] sm:$0x1]
      %v560 = vadd.f32 %v557, %v559
      %561 = vst [vmem:[%s556] sm:$0x1] %v560
    $region241: #{tpu_custom_call.1} parent=1 // loop_footer
      %s554 = sadd.s32 1, %s550
    $region242: #{tpu_custom_call.1} parent=1 // loop_footer_branch
      %549 = sbr.rel target = $region238
    $region243: #{tpu_custom_call.1} parent=1 // loop_exit
      _
    %v562 = vld [vmem:[#allocation2] sm:$0xff]
    %v563 = vld [vmem:[#allocation2 + $0x8] sm:$0xff]
    %v564 = vmul.f32 %v562, 1.1
    %v565 = vmul.f32 %v563, 1.1
    %v566 = vld [vmem:[#allocation4] sm:$0xff]
    %v567 = vld [vmem:[#allocation4 + $0x8] sm:$0xff]
    %v568 = vadd.f32 %v564, %v566
    %v569 = vadd.f32 %v565, %v567
    %v570 = vpack.c.bf16 %v569, %v568
    %v571 = vld [vmem:[%s17] sm:$0xf]
    %v572 = vld [vmem:[%s17 + $0x4] sm:$0xf]
    %v573 = vld [vmem:[%s17 + $0x8] sm:$0xf]
    %v574 = vld [vmem:[%s17 + $0xc] sm:$0xf]
    %v575 = vld [vmem:[%s17 + $0x10] sm:$0xf]
    %v576 = vld [vmem:[%s17 + $0x14] sm:$0xf]
    %v577 = vld [vmem:[%s17 + $0x18] sm:$0xf]
    %v578 = vld [vmem:[%s17 + $0x1c] sm:$0xf]
    %v579 = vld [vmem:[%s17 + $0x20] sm:$0xf]
    %v580 = vld [vmem:[%s17 + $0x24] sm:$0xf]
    %v581 = vld [vmem:[%s17 + $0x28] sm:$0xf]
    %v582 = vld [vmem:[%s17 + $0x2c] sm:$0xf]
    %v583 = vld [vmem:[%s17 + $0x30] sm:$0xf]
    %v584 = vld [vmem:[%s17 + $0x34] sm:$0xf]
    %v585 = vld [vmem:[%s17 + $0x38] sm:$0xf]
    %v586 = vld [vmem:[%s17 + $0x3c] sm:$0xf]
    %v587 = vld [vmem:[#allocation15] sm:$0x1]
    %v589 = vlaneseq
    %v590 = vshrl.u32 %v589, 7
    %v591 = vsub.s32 0, %v590
    %v592 = vrot.slane %v587, %v591
    %v610 = vunpack.c.l.b16 %v571
    %v611 = vunpack.c.l.b16 %v572
    %v612 = vunpack.c.l.b16 %v573
    %v613 = vunpack.c.l.b16 %v574
    %v614 = vunpack.c.l.b16 %v575
    %v615 = vunpack.c.l.b16 %v576
    %v616 = vunpack.c.l.b16 %v577
    %v617 = vunpack.c.l.b16 %v578
    %v618 = vunpack.c.l.b16 %v579
    %v619 = vunpack.c.l.b16 %v580
    %v620 = vunpack.c.l.b16 %v581
    %v621 = vunpack.c.l.b16 %v582
    %v622 = vunpack.c.l.b16 %v583
    %v623 = vunpack.c.l.b16 %v584
    %v624 = vunpack.c.l.b16 %v585
    %v625 = vunpack.c.l.b16 %v586
    %v626 = vpack.c.b16 %v611, %v610
    %v627 = vpack.c.b16 %v613, %v612
    %v628 = vpack.c.b16 %v615, %v614
    %v629 = vpack.c.b16 %v617, %v616
    %v630 = vpack.c.b16 %v619, %v618
    %v631 = vpack.c.b16 %v621, %v620
    %v632 = vpack.c.b16 %v623, %v622
    %v633 = vpack.c.b16 %v625, %v624
    %642 = vmatprep.subr.bf16.mxu0 0
    %643 = vmatpush1.bf16.msra.mxu0 %v626
    %644 = vmatprep.subr.bf16.mxu0 0
    %645 = vmatpush1.bf16.msra.mxu0 %v627
    %646 = vmatprep.subr.bf16.mxu0 0
    %647 = vmatpush1.bf16.msra.mxu0 %v628
    %648 = vmatprep.subr.bf16.mxu0 0
    %649 = vmatpush1.bf16.msra.mxu0 %v629
    %650 = vmatprep.subr.bf16.mxu0 0
    %651 = vmatpush1.bf16.msra.mxu0 %v630
    %652 = vmatprep.subr.bf16.mxu0 0
    %653 = vmatpush1.bf16.msra.mxu0 %v631
    %654 = vmatprep.subr.bf16.mxu0 0
    %655 = vmatpush1.bf16.msra.mxu0 %v632
    %656 = vmatprep.subr.bf16.mxu0 0
    %657 = vmatpush1.bf16.msra.mxu0 %v633
    %658 = vmatprep.subr.bf16.mxu0 0
    %659 = vmatpush1.bf16.msra.mxu0 0
    %660 = vmatprep.subr.bf16.mxu0 0
    %661 = vmatpush1.bf16.msra.mxu0 0
    %662 = vmatprep.subr.bf16.mxu0 0
    %663 = vmatpush1.bf16.msra.mxu0 0
    %664 = vmatprep.subr.bf16.mxu0 0
    %665 = vmatpush1.bf16.msra.mxu0 0
    %666 = vmatprep.subr.bf16.mxu0 0
    %667 = vmatpush1.bf16.msra.mxu0 0
    %668 = vmatprep.subr.bf16.mxu0 0
    %669 = vmatpush1.bf16.msra.mxu0 0
    %670 = vmatprep.subr.bf16.mxu0 0
    %671 = vmatpush1.bf16.msra.mxu0 0
    %672 = vmatprep.subr.bf16.mxu0 0
    %673 = vmatpush1.bf16.msra.mxu0 0
    %674 = vmatprep.mubr.bf16.mxu0 0
    %675 = vmatmul.mubr.bf16.gmra.mrb[0].mxu0 %v570
    %v676 = vpop.f32.mrb[0].mxu0
    %v677 = vadd.f32 %v592, %v676
    %v678 = vpop.f32.mrb[0].mxu0
    %v679 = vpop.f32.mrb[0].mxu0
    %v680 = vadd.f32 %v592, %v679
    %v681 = vpop.f32.mrb[0].mxu0
    %682 = vdwg.mxu0
    %v683 = vld [vmem:[#allocation17] sm:$0x1]
    %v684 = vld [vmem:[#allocation18] sm:$0x1]
    %v685 = vadd.f32 %v677, %v680
    %v686 = vrot.slane %v685, 4
    %v687 = vadd.f32 %v685, %v686
    %v688 = vrot.slane %v687, 2
    %v689 = vadd.f32 %v687, %v688
    %v690 = vrot.slane %v689, 1
    %v691 = vadd.f32 %v689, %v690
    %v692 = vrcp.pop 16.0
    %v693 = vmul.f32 %v691, %v692
    %v694 = vsub.f32 %v677, %v693
    %v695 = vsub.f32 %v680, %v693
    %v696 = vmul.f32 %v694, %v694
    %v697 = vmul.f32 %v695, %v695
    %v698 = vadd.f32 %v696, %v697
    %v699 = vrot.slane %v698, 4
    %v700 = vadd.f32 %v698, %v699
    %v701 = vrot.slane %v700, 2
    %v702 = vadd.f32 %v700, %v701
    %v703 = vrot.slane %v702, 1
    %v704 = vadd.f32 %v702, %v703
    %v705 = vmul.f32 %v704, %v692
    %v706 = vadd.f32 %v705, 1e-05
    %v707 = vrsqrt.pop %v706
    %v708 = vmul.f32 %v694, %v707
    %v709 = vmul.f32 %v695, %v707
    %v711 = vlaneseq
    %v712 = vshrl.u32 %v711, 7
    %v713 = vsub.s32 0, %v712
    %v714 = vrot.slane %v683, %v713
    %v716 = vmul.f32 %v708, %v714
    %v717 = vmul.f32 %v709, %v714
    %v719 = vlaneseq
    %v720 = vshrl.u32 %v719, 7
    %v721 = vsub.s32 0, %v720
    %v722 = vrot.slane %v684, %v721
    %v724 = vadd.f32 %v716, %v722
    %v725 = vadd.f32 %v717, %v722
    %vm726 = vcmp.gt.f32.partialorder %v724, 0.0
    %vm727 = vcmp.gt.f32.partialorder %v725, 0.0
    %v728 = vmul.f32 %v724, 0.01
    %v729 = vmul.f32 %v725, 0.01
    %v730 = vsel %vm726, %v724, %v728
    %v731 = vsel %vm727, %v725, %v729
    %v732 = vpack.c.bf16 %v731, %v730
    %v733 = vld [vmem:[#allocation20] sm:$0xf]
    %v734 = vld [vmem:[#allocation20 + $0x4] sm:$0xf]
    %v735 = vld [vmem:[#allocation20 + $0x8] sm:$0xf]
    %v736 = vld [vmem:[#allocation20 + $0xc] sm:$0xf]
    %v737 = vld [vmem:[#allocation20 + $0x10] sm:$0xf]
    %v738 = vld [vmem:[#allocation20 + $0x14] sm:$0xf]
    %v739 = vld [vmem:[#allocation20 + $0x18] sm:$0xf]
    %v740 = vld [vmem:[#allocation20 + $0x1c] sm:$0xf]
    %v741 = vld [vmem:[#allocation20 + $0x20] sm:$0xf]
    %v742 = vld [vmem:[#allocation20 + $0x24] sm:$0xf]
    %v743 = vld [vmem:[#allocation20 + $0x28] sm:$0xf]
    %v744 = vld [vmem:[#allocation20 + $0x2c] sm:$0xf]
    %v745 = vld [vmem:[#allocation20 + $0x30] sm:$0xf]
    %v746 = vld [vmem:[#allocation20 + $0x34] sm:$0xf]
    %v747 = vld [vmem:[#allocation20 + $0x38] sm:$0xf]
    %v748 = vld [vmem:[#allocation20 + $0x3c] sm:$0xf]
    %v749 = vld [vmem:[#allocation21] sm:$0x1]
    %v751 = vlaneseq
    %v752 = vshrl.u32 %v751, 7
    %v753 = vsub.s32 0, %v752
    %v754 = vrot.slane %v749, %v753
    %v772 = vunpack.c.l.b16 %v733
    %v773 = vunpack.c.l.b16 %v734
    %v774 = vunpack.c.l.b16 %v735
    %v775 = vunpack.c.l.b16 %v736
    %v776 = vunpack.c.l.b16 %v737
    %v777 = vunpack.c.l.b16 %v738
    %v778 = vunpack.c.l.b16 %v739
    %v779 = vunpack.c.l.b16 %v740
    %v780 = vunpack.c.l.b16 %v741
    %v781 = vunpack.c.l.b16 %v742
    %v782 = vunpack.c.l.b16 %v743
    %v783 = vunpack.c.l.b16 %v744
    %v784 = vunpack.c.l.b16 %v745
    %v785 = vunpack.c.l.b16 %v746
    %v786 = vunpack.c.l.b16 %v747
    %v787 = vunpack.c.l.b16 %v748
    %v788 = vpack.c.b16 %v773, %v772
    %v789 = vpack.c.b16 %v775, %v774
    %v790 = vpack.c.b16 %v777, %v776
    %v791 = vpack.c.b16 %v779, %v778
    %v792 = vpack.c.b16 %v781, %v780
    %v793 = vpack.c.b16 %v783, %v782
    %v794 = vpack.c.b16 %v785, %v784
    %v795 = vpack.c.b16 %v787, %v786
    %804 = vmatprep.subr.bf16.mxu0 0
    %805 = vmatpush1.bf16.msra.mxu0 %v788
    %806 = vmatprep.subr.bf16.mxu0 0
    %807 = vmatpush1.bf16.msra.mxu0 %v789
    %808 = vmatprep.subr.bf16.mxu0 0
    %809 = vmatpush1.bf16.msra.mxu0 %v790
    %810 = vmatprep.subr.bf16.mxu0 0
    %811 = vmatpush1.bf16.msra.mxu0 %v791
    %812 = vmatprep.subr.bf16.mxu0 0
    %813 = vmatpush1.bf16.msra.mxu0 %v792
    %814 = vmatprep.subr.bf16.mxu0 0
    %815 = vmatpush1.bf16.msra.mxu0 %v793
    %816 = vmatprep.subr.bf16.mxu0 0
    %817 = vmatpush1.bf16.msra.mxu0 %v794
    %818 = vmatprep.subr.bf16.mxu0 0
    %819 = vmatpush1.bf16.msra.mxu0 %v795
    %820 = vmatprep.subr.bf16.mxu0 0
    %821 = vmatpush1.bf16.msra.mxu0 0
    %822 = vmatprep.subr.bf16.mxu0 0
    %823 = vmatpush1.bf16.msra.mxu0 0
    %824 = vmatprep.subr.bf16.mxu0 0
    %825 = vmatpush1.bf16.msra.mxu0 0
    %826 = vmatprep.subr.bf16.mxu0 0
    %827 = vmatpush1.bf16.msra.mxu0 0
    %828 = vmatprep.subr.bf16.mxu0 0
    %829 = vmatpush1.bf16.msra.mxu0 0
    %830 = vmatprep.subr.bf16.mxu0 0
    %831 = vmatpush1.bf16.msra.mxu0 0
    %832 = vmatprep.subr.bf16.mxu0 0
    %833 = vmatpush1.bf16.msra.mxu0 0
    %834 = vmatprep.subr.bf16.mxu0 0
    %835 = vmatpush1.bf16.msra.mxu0 0
    %836 = vmatprep.mubr.bf16.mxu0 0
    %837 = vmatmul.mubr.bf16.gmra.mrb[0].mxu0 %v732
    %v838 = vpop.f32.mrb[0].mxu0
    %v839 = vadd.f32 %v754, %v838
    %v840 = vpop.f32.mrb[0].mxu0
    %v841 = vpop.f32.mrb[0].mxu0
    %v842 = vadd.f32 %v754, %v841
    %v843 = vpop.f32.mrb[0].mxu0
    %844 = vdwg.mxu0
    %v845 = vld [vmem:[#allocation23] sm:$0x1]
    %v846 = vld [vmem:[#allocation24] sm:$0x1]
    %v847 = vadd.f32 %v839, %v842
    %v848 = vrot.slane %v847, 4
    %v849 = vadd.f32 %v847, %v848
    %v850 = vrot.slane %v849, 2
    %v851 = vadd.f32 %v849, %v850
    %v852 = vrot.slane %v851, 1
    %v853 = vadd.f32 %v851, %v852
    %v854 = vmul.f32 %v853, %v692
    %v855 = vsub.f32 %v839, %v854
    %v856 = vsub.f32 %v842, %v854
    %v857 = vmul.f32 %v855, %v855
    %v858 = vmul.f32 %v856, %v856
    %v859 = vadd.f32 %v857, %v858
    %v860 = vrot.slane %v859, 4
    %v861 = vadd.f32 %v859, %v860
    %v862 = vrot.slane %v861, 2
    %v863 = vadd.f32 %v861, %v862
    %v864 = vrot.slane %v863, 1
    %v865 = vadd.f32 %v863, %v864
    %v866 = vmul.f32 %v865, %v692
    %v867 = vadd.f32 %v866, 1e-05
    %v868 = vrsqrt.pop %v867
    %v869 = vmul.f32 %v855, %v868
    %v870 = vmul.f32 %v856, %v868
    %v872 = vlaneseq
    %v873 = vshrl.u32 %v872, 7
    %v874 = vsub.s32 0, %v873
    %v875 = vrot.slane %v845, %v874
    %v877 = vmul.f32 %v869, %v875
    %v878 = vmul.f32 %v870, %v875
    %v880 = vlaneseq
    %v881 = vshrl.u32 %v880, 7
    %v882 = vsub.s32 0, %v881
    %v883 = vrot.slane %v846, %v882
    %v885 = vadd.f32 %v877, %v883
    %v886 = vadd.f32 %v878, %v883
    %vm887 = vcmp.gt.f32.partialorder %v885, 0.0
    %vm888 = vcmp.gt.f32.partialorder %v886, 0.0
    %v889 = vmul.f32 %v885, 0.01
    %v890 = vmul.f32 %v886, 0.01
    %v891 = vsel %vm887, %v885, %v889
    %v892 = vsel %vm888, %v886, %v890
    %893 = vst [vmem:[#allocation2] sm:$0xff] %v891
    %894 = vst [vmem:[#allocation2 + $0x8] sm:$0xff] %v892
    loop: start=0, step=1, limit=32
    $region244: #{tpu_custom_call.1} parent=1 // loop_pre_header
      _
    $region245: #{tpu_custom_call.1} parent=1 // loop_header
      %s896 = sphi 0, %s900
      %p897 = scmp.ge.s32.totalorder %s896, 32
    $region246: #{tpu_custom_call.1} parent=1 // loop_header_branch
      %899 = sbr.rel (%p897) target = $region250
    $region247: #{tpu_custom_call.1} parent=1 // loop_body
      %s901 = sld [smem:[#allocation9 + %s896]]
      %s902 = scalar_lea.vmem [#allocation2], %s901
      %v903 = vld [vmem:[%s902] sm:$0x1]
      %s904 = scalar_lea.vmem [#allocation3], %s896
      %905 = vst [vmem:[%s904] sm:$0x1] %v903
    $region248: #{tpu_custom_call.1} parent=1 // loop_footer
      %s900 = sadd.s32 1, %s896
    $region249: #{tpu_custom_call.1} parent=1 // loop_footer_branch
      %895 = sbr.rel target = $region245
    $region250: #{tpu_custom_call.1} parent=1 // loop_exit
      _
    %v906 = vld [vmem:[#allocation3] sm:$0xff]
    %v907 = vld [vmem:[#allocation3 + $0x8] sm:$0xff]
    %v908 = vld [vmem:[#allocation3 + $0x10] sm:$0xff]
    %v909 = vld [vmem:[#allocation3 + $0x18] sm:$0xff]
    %v910 = vadd.f32 %v906, %v504
    %v911 = vadd.f32 %v907, %v508
    %v912 = vadd.f32 %v908, %v514
    %v913 = vadd.f32 %v909, %v518
    %v914 = vmax.f32 %v910, 0.0
    %v915 = vmax.f32 %v911, 0.0
    %v916 = vmax.f32 %v912, 0.0
    %v917 = vmax.f32 %v913, 0.0
    %918 = vst [vmem:[#allocation3] sm:$0xff] %v914
    %919 = vst [vmem:[#allocation3 + $0x8] sm:$0xff] %v915
    %920 = vst [vmem:[#allocation3 + $0x10] sm:$0xff] %v916
    %921 = vst [vmem:[#allocation3 + $0x18] sm:$0xff] %v917
    %922 = vst [vmem:[#allocation4] sm:$0xff] 0.0
    %923 = vst [vmem:[#allocation4 + $0x8] sm:$0xff] 0.0
    loop: start=0, step=1, limit=32
    $region251: #{tpu_custom_call.1} parent=1 // loop_pre_header
      _
    $region252: #{tpu_custom_call.1} parent=1 // loop_header
      %s925 = sphi 0, %s929
      %p926 = scmp.ge.s32.totalorder %s925, 32
    $region253: #{tpu_custom_call.1} parent=1 // loop_header_branch
      %928 = sbr.rel (%p926) target = $region257
    $region254: #{tpu_custom_call.1} parent=1 // loop_body
      %s930 = sld [smem:[#allocation10 + %s925]]
      %s931 = scalar_lea.vmem [#allocation4], %s930
      %v932 = vld [vmem:[%s931] sm:$0x1]
      %s933 = scalar_lea.vmem [#allocation3], %s925
      %v934 = vld [vmem:[%s933] sm:$0x1]
      %v935 = vadd.f32 %v932, %v934
      %936 = vst [vmem:[%s931] sm:$0x1] %v935
    $region255: #{tpu_custom_call.1} parent=1 // loop_footer
      %s929 = sadd.s32 1, %s925
    $region256: #{tpu_custom_call.1} parent=1 // loop_footer_branch
      %924 = sbr.rel target = $region252
    $region257: #{tpu_custom_call.1} parent=1 // loop_exit
      _
    %v937 = vld [vmem:[#allocation2] sm:$0xff]
    %v938 = vld [vmem:[#allocation2 + $0x8] sm:$0xff]
    %v939 = vmul.f32 %v937, 1.1
    %v940 = vmul.f32 %v938, 1.1
    %v941 = vld [vmem:[#allocation4] sm:$0xff]
    %v942 = vld [vmem:[#allocation4 + $0x8] sm:$0xff]
    %v943 = vadd.f32 %v939, %v941
    %v944 = vadd.f32 %v940, %v942
    %v945 = vpack.c.bf16 %v944, %v943
    %v946 = vld [vmem:[#allocation26] sm:$0xf]
    %v947 = vld [vmem:[#allocation26 + $0x4] sm:$0xf]
    %v948 = vld [vmem:[#allocation26 + $0x8] sm:$0xf]
    %v949 = vld [vmem:[#allocation26 + $0xc] sm:$0xf]
    %v950 = vld [vmem:[#allocation26 + $0x10] sm:$0xf]
    %v951 = vld [vmem:[#allocation26 + $0x14] sm:$0xf]
    %v952 = vld [vmem:[#allocation26 + $0x18] sm:$0xf]
    %v953 = vld [vmem:[#allocation26 + $0x1c] sm:$0xf]
    %v954 = vld [vmem:[#allocation26 + $0x20] sm:$0xf]
    %v955 = vld [vmem:[#allocation26 + $0x24] sm:$0xf]
    %v956 = vld [vmem:[#allocation26 + $0x28] sm:$0xf]
    %v957 = vld [vmem:[#allocation26 + $0x2c] sm:$0xf]
    %v958 = vld [vmem:[#allocation26 + $0x30] sm:$0xf]
    %v959 = vld [vmem:[#allocation26 + $0x34] sm:$0xf]
    %v960 = vld [vmem:[#allocation26 + $0x38] sm:$0xf]
    %v961 = vld [vmem:[#allocation26 + $0x3c] sm:$0xf]
    %v962 = vld [vmem:[#allocation27] sm:$0x1]
    %v964 = vlaneseq
    %v965 = vshrl.u32 %v964, 7
    %v966 = vsub.s32 0, %v965
    %v967 = vrot.slane %v962, %v966
    %v985 = vunpack.c.l.b16 %v946
    %v986 = vunpack.c.l.b16 %v947
    %v987 = vunpack.c.l.b16 %v948
    %v988 = vunpack.c.l.b16 %v949
    %v989 = vunpack.c.l.b16 %v950
    %v990 = vunpack.c.l.b16 %v951
    %v991 = vunpack.c.l.b16 %v952
    %v992 = vunpack.c.l.b16 %v953
    %v993 = vunpack.c.l.b16 %v954
    %v994 = vunpack.c.l.b16 %v955
    %v995 = vunpack.c.l.b16 %v956
    %v996 = vunpack.c.l.b16 %v957
    %v997 = vunpack.c.l.b16 %v958
    %v998 = vunpack.c.l.b16 %v959
    %v999 = vunpack.c.l.b16 %v960
    %v1000 = vunpack.c.l.b16 %v961
    %v1001 = vpack.c.b16 %v986, %v985
    %v1002 = vpack.c.b16 %v988, %v987
    %v1003 = vpack.c.b16 %v990, %v989
    %v1004 = vpack.c.b16 %v992, %v991
    %v1005 = vpack.c.b16 %v994, %v993
    %v1006 = vpack.c.b16 %v996, %v995
    %v1007 = vpack.c.b16 %v998, %v997
    %v1008 = vpack.c.b16 %v1000, %v999
    %1017 = vmatprep.subr.bf16.mxu0 0
    %1018 = vmatpush1.bf16.msra.mxu0 %v1001
    %1019 = vmatprep.subr.bf16.mxu0 0
    %1020 = vmatpush1.bf16.msra.mxu0 %v1002
    %1021 = vmatprep.subr.bf16.mxu0 0
    %1022 = vmatpush1.bf16.msra.mxu0 %v1003
    %1023 = vmatprep.subr.bf16.mxu0 0
    %1024 = vmatpush1.bf16.msra.mxu0 %v1004
    %1025 = vmatprep.subr.bf16.mxu0 0
    %1026 = vmatpush1.bf16.msra.mxu0 %v1005
    %1027 = vmatprep.subr.bf16.mxu0 0
    %1028 = vmatpush1.bf16.msra.mxu0 %v1006
    %1029 = vmatprep.subr.bf16.mxu0 0
    %1030 = vmatpush1.bf16.msra.mxu0 %v1007
    %1031 = vmatprep.subr.bf16.mxu0 0
    %1032 = vmatpush1.bf16.msra.mxu0 %v1008
    %1033 = vmatprep.subr.bf16.mxu0 0
    %1034 = vmatpush1.bf16.msra.mxu0 0
    %1035 = vmatprep.subr.bf16.mxu0 0
    %1036 = vmatpush1.bf16.msra.mxu0 0
    %1037 = vmatprep.subr.bf16.mxu0 0
    %1038 = vmatpush1.bf16.msra.mxu0 0
    %1039 = vmatprep.subr.bf16.mxu0 0
    %1040 = vmatpush1.bf16.msra.mxu0 0
    %1041 = vmatprep.subr.bf16.mxu0 0
    %1042 = vmatpush1.bf16.msra.mxu0 0
    %1043 = vmatprep.subr.bf16.mxu0 0
    %1044 = vmatpush1.bf16.msra.mxu0 0
    %1045 = vmatprep.subr.bf16.mxu0 0
    %1046 = vmatpush1.bf16.msra.mxu0 0
    %1047 = vmatprep.subr.bf16.mxu0 0
    %1048 = vmatpush1.bf16.msra.mxu0 0
    %1049 = vmatprep.mubr.bf16.mxu0 0
    %1050 = vmatmul.mubr.bf16.gmra.mrb[0].mxu0 %v945
    %v1051 = vpop.f32.mrb[0].mxu0
    %v1052 = vadd.f32 %v967, %v1051
    %v1053 = vpop.f32.mrb[0].mxu0
    %v1054 = vpop.f32.mrb[0].mxu0
    %v1055 = vadd.f32 %v967, %v1054
    %v1056 = vpop.f32.mrb[0].mxu0
    %1057 = vdwg.mxu0
    %v1058 = vld [vmem:[#allocation29] sm:$0x1]
    %v1059 = vld [vmem:[#allocation30] sm:$0x1]
    %v1060 = vadd.f32 %v1052, %v1055
    %v1061 = vrot.slane %v1060, 4
    %v1062 = vadd.f32 %v1060, %v1061
    %v1063 = vrot.slane %v1062, 2
    %v1064 = vadd.f32 %v1062, %v1063
    %v1065 = vrot.slane %v1064, 1
    %v1066 = vadd.f32 %v1064, %v1065
    %v1067 = vmul.f32 %v1066, %v692
    %v1068 = vsub.f32 %v1052, %v1067
    %v1069 = vsub.f32 %v1055, %v1067
    %v1070 = vmul.f32 %v1068, %v1068
    %v1071 = vmul.f32 %v1069, %v1069
    %v1072 = vadd.f32 %v1070, %v1071
    %v1073 = vrot.slane %v1072, 4
    %v1074 = vadd.f32 %v1072, %v1073
    %v1075 = vrot.slane %v1074, 2
    %v1076 = vadd.f32 %v1074, %v1075
    %v1077 = vrot.slane %v1076, 1
    %v1078 = vadd.f32 %v1076, %v1077
    %v1079 = vmul.f32 %v1078, %v692
    %v1080 = vadd.f32 %v1079, 1e-05
    %v1081 = vrsqrt.pop %v1080
    %v1082 = vmul.f32 %v1068, %v1081
    %v1083 = vmul.f32 %v1069, %v1081
    %v1085 = vlaneseq
    %v1086 = vshrl.u32 %v1085, 7
    %v1087 = vsub.s32 0, %v1086
    %v1088 = vrot.slane %v1058, %v1087
    %v1090 = vmul.f32 %v1082, %v1088
    %v1091 = vmul.f32 %v1083, %v1088
    %v1093 = vlaneseq
    %v1094 = vshrl.u32 %v1093, 7
    %v1095 = vsub.s32 0, %v1094
    %v1096 = vrot.slane %v1059, %v1095
    %v1098 = vadd.f32 %v1090, %v1096
    %v1099 = vadd.f32 %v1091, %v1096
    %vm1100 = vcmp.gt.f32.partialorder %v1098, 0.0
    %vm1101 = vcmp.gt.f32.partialorder %v1099, 0.0
    %v1102 = vmul.f32 %v1098, 0.01
    %v1103 = vmul.f32 %v1099, 0.01
    %v1104 = vsel %vm1100, %v1098, %v1102
    %v1105 = vsel %vm1101, %v1099, %v1103
    %v1106 = vpack.c.bf16 %v1105, %v1104
    %v1107 = vld [vmem:[#allocation32] sm:$0xf]
    %v1108 = vld [vmem:[#allocation32 + $0x4] sm:$0xf]
    %v1109 = vld [vmem:[#allocation32 + $0x8] sm:$0xf]
    %v1110 = vld [vmem:[#allocation32 + $0xc] sm:$0xf]
    %v1111 = vld [vmem:[#allocation32 + $0x10] sm:$0xf]
    %v1112 = vld [vmem:[#allocation32 + $0x14] sm:$0xf]
    %v1113 = vld [vmem:[#allocation32 + $0x18] sm:$0xf]
    %v1114 = vld [vmem:[#allocation32 + $0x1c] sm:$0xf]
    %v1115 = vld [vmem:[#allocation32 + $0x20] sm:$0xf]
    %v1116 = vld [vmem:[#allocation32 + $0x24] sm:$0xf]
    %v1117 = vld [vmem:[#allocation32 + $0x28] sm:$0xf]
    %v1118 = vld [vmem:[#allocation32 + $0x2c] sm:$0xf]
    %v1119 = vld [vmem:[#allocation32 + $0x30] sm:$0xf]
    %v1120 = vld [vmem:[#allocation32 + $0x34] sm:$0xf]
    %v1121 = vld [vmem:[#allocation32 + $0x38] sm:$0xf]
    %v1122 = vld [vmem:[#allocation32 + $0x3c] sm:$0xf]
    %v1123 = vld [vmem:[#allocation33] sm:$0x1]
    %v1125 = vlaneseq
    %v1126 = vshrl.u32 %v1125, 7
    %v1127 = vsub.s32 0, %v1126
    %v1128 = vrot.slane %v1123, %v1127
    %v1146 = vunpack.c.l.b16 %v1107
    %v1147 = vunpack.c.l.b16 %v1108
    %v1148 = vunpack.c.l.b16 %v1109
    %v1149 = vunpack.c.l.b16 %v1110
    %v1150 = vunpack.c.l.b16 %v1111
    %v1151 = vunpack.c.l.b16 %v1112
    %v1152 = vunpack.c.l.b16 %v1113
    %v1153 = vunpack.c.l.b16 %v1114
    %v1154 = vunpack.c.l.b16 %v1115
    %v1155 = vunpack.c.l.b16 %v1116
    %v1156 = vunpack.c.l.b16 %v1117
    %v1157 = vunpack.c.l.b16 %v1118
    %v1158 = vunpack.c.l.b16 %v1119
    %v1159 = vunpack.c.l.b16 %v1120
    %v1160 = vunpack.c.l.b16 %v1121
    %v1161 = vunpack.c.l.b16 %v1122
    %v1162 = vpack.c.b16 %v1147, %v1146
    %v1163 = vpack.c.b16 %v1149, %v1148
    %v1164 = vpack.c.b16 %v1151, %v1150
    %v1165 = vpack.c.b16 %v1153, %v1152
    %v1166 = vpack.c.b16 %v1155, %v1154
    %v1167 = vpack.c.b16 %v1157, %v1156
    %v1168 = vpack.c.b16 %v1159, %v1158
    %v1169 = vpack.c.b16 %v1161, %v1160
    %1178 = vmatprep.subr.bf16.mxu0 0
    %1179 = vmatpush1.bf16.msra.mxu0 %v1162
    %1180 = vmatprep.subr.bf16.mxu0 0
    %1181 = vmatpush1.bf16.msra.mxu0 %v1163
    %1182 = vmatprep.subr.bf16.mxu0 0
    %1183 = vmatpush1.bf16.msra.mxu0 %v1164
    %1184 = vmatprep.subr.bf16.mxu0 0
    %1185 = vmatpush1.bf16.msra.mxu0 %v1165
    %1186 = vmatprep.subr.bf16.mxu0 0
    %1187 = vmatpush1.bf16.msra.mxu0 %v1166
    %1188 = vmatprep.subr.bf16.mxu0 0
    %1189 = vmatpush1.bf16.msra.mxu0 %v1167
    %1190 = vmatprep.subr.bf16.mxu0 0
    %1191 = vmatpush1.bf16.msra.mxu0 %v1168
    %1192 = vmatprep.subr.bf16.mxu0 0
    %1193 = vmatpush1.bf16.msra.mxu0 %v1169
    %1194 = vmatprep.subr.bf16.mxu0 0
    %1195 = vmatpush1.bf16.msra.mxu0 0
    %1196 = vmatprep.subr.bf16.mxu0 0
    %1197 = vmatpush1.bf16.msra.mxu0 0
    %1198 = vmatprep.subr.bf16.mxu0 0
    %1199 = vmatpush1.bf16.msra.mxu0 0
    %1200 = vmatprep.subr.bf16.mxu0 0
    %1201 = vmatpush1.bf16.msra.mxu0 0
    %1202 = vmatprep.subr.bf16.mxu0 0
    %1203 = vmatpush1.bf16.msra.mxu0 0
    %1204 = vmatprep.subr.bf16.mxu0 0
    %1205 = vmatpush1.bf16.msra.mxu0 0
    %1206 = vmatprep.subr.bf16.mxu0 0
    %1207 = vmatpush1.bf16.msra.mxu0 0
    %1208 = vmatprep.subr.bf16.mxu0 0
    %1209 = vmatpush1.bf16.msra.mxu0 0
    %1210 = vmatprep.mubr.bf16.mxu0 0
    %1211 = vmatmul.mubr.bf16.gmra.mrb[0].mxu0 %v1106
    %v1212 = vpop.f32.mrb[0].mxu0
    %v1213 = vadd.f32 %v1128, %v1212
    %v1214 = vpop.f32.mrb[0].mxu0
    %v1215 = vpop.f32.mrb[0].mxu0
    %v1216 = vadd.f32 %v1128, %v1215
    %v1217 = vpop.f32.mrb[0].mxu0
    %1218 = vdwg.mxu0
    %vm1219 = vcmp.gt.f32.partialorder %v1213, 0.0
    %vm1220 = vcmp.gt.f32.partialorder %v1216, 0.0
    %v1221 = vmul.f32 %v1213, 0.01
    %v1222 = vmul.f32 %v1216, 0.01
    %v1223 = vsel %vm1219, %v1213, %v1221
    %v1224 = vsel %vm1220, %v1216, %v1222
    %1225 = vst [vmem:[#allocation2] sm:$0xff] %v1223
    %1226 = vst [vmem:[#allocation2 + $0x8] sm:$0xff] %v1224
    %v1227 = vld [vmem:[#allocation2] sm:$0xff]
    %v1228 = vld [vmem:[#allocation2 + $0x8] sm:$0xff]
    %v1229 = vld [vmem:[%s11] sm:$0x3]
    %vm1230 = vcmask 130048
    %v1232 = vsel %vm1230, %v1229, 0
    %1234 = vmatprep.subr.mxu0 0.0
    %1235 = vmatpush1.msra.mxu0 %v1227
    %1236 = vmatprep.subr.mxu0 0.0
    %1237 = vmatpush1.msra.mxu0 %v1228
    %1238 = vmatprep.subr.mxu0 0.0
    %1239 = vmatpush1.msra.mxu0 0.0
    %1240 = vmatprep.subr.mxu0 0.0
    %1241 = vmatpush1.msra.mxu0 0.0
    %1242 = vmatprep.subr.mxu0 0.0
    %1243 = vmatpush1.msra.mxu0 0.0
    %1244 = vmatprep.subr.mxu0 0.0
    %1245 = vmatpush1.msra.mxu0 0.0
    %1246 = vmatprep.subr.mxu0 0.0
    %1247 = vmatpush1.msra.mxu0 0.0
    %1248 = vmatprep.subr.mxu0 0.0
    %1249 = vmatpush1.msra.mxu0 0.0
    %1250 = vmatprep.subr.mxu0 0.0
    %1251 = vmatpush1.msra.mxu0 0.0
    %1252 = vmatprep.subr.mxu0 0.0
    %1253 = vmatpush1.msra.mxu0 0.0
    %1254 = vmatprep.subr.mxu0 0.0
    %1255 = vmatpush1.msra.mxu0 0.0
    %1256 = vmatprep.subr.mxu0 0.0
    %1257 = vmatpush1.msra.mxu0 0.0
    %1258 = vmatprep.subr.mxu0 0.0
    %1259 = vmatpush1.msra.mxu0 0.0
    %1260 = vmatprep.subr.mxu0 0.0
    %1261 = vmatpush1.msra.mxu0 0.0
    %1262 = vmatprep.subr.mxu0 0.0
    %1263 = vmatpush1.msra.mxu0 0.0
    %1264 = vmatprep.subr.mxu0 0.0
    %1265 = vmatpush1.msra.mxu0 0.0
    %1266 = vmatprep.subr.mxu0 0.0
    %1267 = vmatpush1.msra.mxu0 0.0
    %1268 = vmatprep.subr.mxu0 0.0
    %1269 = vmatpush1.msra.mxu0 0.0
    %1270 = vmatprep.subr.mxu0 0.0
    %1271 = vmatpush1.msra.mxu0 0.0
    %1272 = vmatprep.subr.mxu0 0.0
    %1273 = vmatpush1.msra.mxu0 0.0
    %1274 = vmatprep.subr.mxu0 0.0
    %1275 = vmatpush1.msra.mxu0 0.0
    %1276 = vmatprep.subr.mxu0 0.0
    %1277 = vmatpush1.msra.mxu0 0.0
    %1278 = vmatprep.subr.mxu0 0.0
    %1279 = vmatpush1.msra.mxu0 0.0
    %1280 = vmatprep.subr.mxu0 0.0
    %1281 = vmatpush1.msra.mxu0 0.0
    %1282 = vmatprep.subr.mxu0 0.0
    %1283 = vmatpush1.msra.mxu0 0.0
    %1284 = vmatprep.subr.mxu0 0.0
    %1285 = vmatpush1.msra.mxu0 0.0
    %1286 = vmatprep.subr.mxu0 0.0
    %1287 = vmatpush1.msra.mxu0 0.0
    %1288 = vmatprep.subr.mxu0 0.0
    %1289 = vmatpush1.msra.mxu0 0.0
    %1290 = vmatprep.subr.mxu0 0.0
    %1291 = vmatpush1.msra.mxu0 0.0
    %1292 = vmatprep.subr.mxu0 0.0
    %1293 = vmatpush1.msra.mxu0 0.0
    %1294 = vmatprep.subr.mxu0 0.0
    %1295 = vmatpush1.msra.mxu0 0.0
    %1296 = vmatprep.subr.mxu0 0.0
    %1297 = vmatpush1.msra.mxu0 0.0
    %1298 = vmatprep.mubr.f32.mxu0 0.0
    %1299 = vmatmul.mubr.f32.gmra.mrb[0].mxu0 %v1232
    %v1300 = vpop.f32.mrb[0].mxu0
    %v1301 = vadd.f32 0.0, %v1300
    %v1302 = vpop.f32.mrb[0].mxu0
    %1303 = vdwg.mxu0
    %v1304 = vld [vmem:[%s9] sm:$0xff]
    %v1305 = vld [vmem:[%s9 + $0x8] sm:$0xff]
    %v1306 = vpack.c.bf16 %v1301, %v1301
    %v1307 = vld [vmem:[#allocation38] sm:$0xf]
    %v1308 = vld [vmem:[#allocation38 + $0x4] sm:$0xf]
    %v1309 = vld [vmem:[#allocation38 + $0x8] sm:$0xf]
    %v1310 = vld [vmem:[#allocation38 + $0xc] sm:$0xf]
    %v1311 = vld [vmem:[#allocation38 + $0x10] sm:$0xf]
    %v1312 = vld [vmem:[#allocation38 + $0x14] sm:$0xf]
    %v1313 = vld [vmem:[#allocation38 + $0x18] sm:$0xf]
    %v1314 = vld [vmem:[#allocation38 + $0x1c] sm:$0xf]
    %v1315 = vld [vmem:[#allocation38 + $0x20] sm:$0xf]
    %v1316 = vld [vmem:[#allocation38 + $0x24] sm:$0xf]
    %v1317 = vld [vmem:[#allocation38 + $0x28] sm:$0xf]
    %v1318 = vld [vmem:[#allocation38 + $0x2c] sm:$0xf]
    %v1319 = vld [vmem:[#allocation38 + $0x30] sm:$0xf]
    %v1320 = vld [vmem:[#allocation38 + $0x34] sm:$0xf]
    %v1321 = vld [vmem:[#allocation38 + $0x38] sm:$0xf]
    %v1322 = vld [vmem:[#allocation38 + $0x3c] sm:$0xf]
    %v1339 = vunpack.c.l.b16 %v1307
    %v1340 = vunpack.c.l.b16 %v1308
    %v1341 = vunpack.c.l.b16 %v1309
    %v1342 = vunpack.c.l.b16 %v1310
    %v1343 = vunpack.c.l.b16 %v1311
    %v1344 = vunpack.c.l.b16 %v1312
    %v1345 = vunpack.c.l.b16 %v1313
    %v1346 = vunpack.c.l.b16 %v1314
    %v1347 = vunpack.c.l.b16 %v1315
    %v1348 = vunpack.c.l.b16 %v1316
    %v1349 = vunpack.c.l.b16 %v1317
    %v1350 = vunpack.c.l.b16 %v1318
    %v1351 = vunpack.c.l.b16 %v1319
    %v1352 = vunpack.c.l.b16 %v1320
    %v1353 = vunpack.c.l.b16 %v1321
    %v1354 = vunpack.c.l.b16 %v1322
    %v1355 = vpack.c.b16 %v1340, %v1339
    %v1356 = vpack.c.b16 %v1342, %v1341
    %v1357 = vpack.c.b16 %v1344, %v1343
    %v1358 = vpack.c.b16 %v1346, %v1345
    %v1359 = vpack.c.b16 %v1348, %v1347
    %v1360 = vpack.c.b16 %v1350, %v1349
    %v1361 = vpack.c.b16 %v1352, %v1351
    %v1362 = vpack.c.b16 %v1354, %v1353
    %1371 = vmatprep.subr.bf16.mxu0 0
    %1372 = vmatpush1.bf16.msra.mxu0 %v1355
    %1373 = vmatprep.subr.bf16.mxu0 0
    %1374 = vmatpush1.bf16.msra.mxu0 %v1356
    %1375 = vmatprep.subr.bf16.mxu0 0
    %1376 = vmatpush1.bf16.msra.mxu0 %v1357
    %1377 = vmatprep.subr.bf16.mxu0 0
    %1378 = vmatpush1.bf16.msra.mxu0 %v1358
    %1379 = vmatprep.subr.bf16.mxu0 0
    %1380 = vmatpush1.bf16.msra.mxu0 %v1359
    %1381 = vmatprep.subr.bf16.mxu0 0
    %1382 = vmatpush1.bf16.msra.mxu0 %v1360
    %1383 = vmatprep.subr.bf16.mxu0 0
    %1384 = vmatpush1.bf16.msra.mxu0 %v1361
    %1385 = vmatprep.subr.bf16.mxu0 0
    %1386 = vmatpush1.bf16.msra.mxu0 %v1362
    %1387 = vmatprep.subr.bf16.mxu0 0
    %1388 = vmatpush1.bf16.msra.mxu0 0
    %1389 = vmatprep.subr.bf16.mxu0 0
    %1390 = vmatpush1.bf16.msra.mxu0 0
    %1391 = vmatprep.subr.bf16.mxu0 0
    %1392 = vmatpush1.bf16.msra.mxu0 0
    %1393 = vmatprep.subr.bf16.mxu0 0
    %1394 = vmatpush1.bf16.msra.mxu0 0
    %1395 = vmatprep.subr.bf16.mxu0 0
    %1396 = vmatpush1.bf16.msra.mxu0 0
    %1397 = vmatprep.subr.bf16.mxu0 0
    %1398 = vmatpush1.bf16.msra.mxu0 0
    %1399 = vmatprep.subr.bf16.mxu0 0
    %1400 = vmatpush1.bf16.msra.mxu0 0
    %1401 = vmatprep.subr.bf16.mxu0 0
    %1402 = vmatpush1.bf16.msra.mxu0 0
    %1403 = vmatprep.mubr.bf16.mxu0 0
    %1404 = vmatmul.mubr.bf16.gmra.mrb[0].mxu0 %v1306
    %v1405 = vpop.f32.mrb[0].mxu0
    %v1406 = vadd.f32 0.0, %v1405
    %v1407 = vpop.f32.mrb[0].mxu0
    %v1408 = vpop.f32.mrb[0].mxu0
    %v1409 = vpop.f32.mrb[0].mxu0
    %1410 = vdwg.mxu0
    %vm1411 = vcmask 15360
    %v1413 = vsel %vm1411, %v1304, 0
    %v1416 = vsel %vm1411, %v1305, 0
    %v1419 = vsel %vm460, %v1406, 0
    %1421 = vmatprep.subr.mxu0 0.0
    %1422 = vmatpush1.msra.mxu0 %v1419
    %1423 = vmatprep.subr.mxu0 0.0
    %1424 = vmatpush1.msra.mxu0 0.0
    %1425 = vmatprep.subr.mxu0 0.0
    %1426 = vmatpush1.msra.mxu0 0.0
    %1427 = vmatprep.subr.mxu0 0.0
    %1428 = vmatpush1.msra.mxu0 0.0
    %1429 = vmatprep.subr.mxu0 0.0
    %1430 = vmatpush1.msra.mxu0 0.0
    %1431 = vmatprep.subr.mxu0 0.0
    %1432 = vmatpush1.msra.mxu0 0.0
    %1433 = vmatprep.subr.mxu0 0.0
    %1434 = vmatpush1.msra.mxu0 0.0
    %1435 = vmatprep.subr.mxu0 0.0
    %1436 = vmatpush1.msra.mxu0 0.0
    %1437 = vmatprep.subr.mxu0 0.0
    %1438 = vmatpush1.msra.mxu0 0.0
    %1439 = vmatprep.subr.mxu0 0.0
    %1440 = vmatpush1.msra.mxu0 0.0
    %1441 = vmatprep.subr.mxu0 0.0
    %1442 = vmatpush1.msra.mxu0 0.0
    %1443 = vmatprep.subr.mxu0 0.0
    %1444 = vmatpush1.msra.mxu0 0.0
    %1445 = vmatprep.subr.mxu0 0.0
    %1446 = vmatpush1.msra.mxu0 0.0
    %1447 = vmatprep.subr.mxu0 0.0
    %1448 = vmatpush1.msra.mxu0 0.0
    %1449 = vmatprep.subr.mxu0 0.0
    %1450 = vmatpush1.msra.mxu0 0.0
    %1451 = vmatprep.subr.mxu0 0.0
    %1452 = vmatpush1.msra.mxu0 0.0
    %1453 = vmatprep.subr.mxu0 0.0
    %1454 = vmatpush1.msra.mxu0 0.0
    %1455 = vmatprep.subr.mxu0 0.0
    %1456 = vmatpush1.msra.mxu0 0.0
    %1457 = vmatprep.subr.mxu0 0.0
    %1458 = vmatpush1.msra.mxu0 0.0
    %1459 = vmatprep.subr.mxu0 0.0
    %1460 = vmatpush1.msra.mxu0 0.0
    %1461 = vmatprep.subr.mxu0 0.0
    %1462 = vmatpush1.msra.mxu0 0.0
    %1463 = vmatprep.subr.mxu0 0.0
    %1464 = vmatpush1.msra.mxu0 0.0
    %1465 = vmatprep.subr.mxu0 0.0
    %1466 = vmatpush1.msra.mxu0 0.0
    %1467 = vmatprep.subr.mxu0 0.0
    %1468 = vmatpush1.msra.mxu0 0.0
    %1469 = vmatprep.subr.mxu0 0.0
    %1470 = vmatpush1.msra.mxu0 0.0
    %1471 = vmatprep.subr.mxu0 0.0
    %1472 = vmatpush1.msra.mxu0 0.0
    %1473 = vmatprep.subr.mxu0 0.0
    %1474 = vmatpush1.msra.mxu0 0.0
    %1475 = vmatprep.subr.mxu0 0.0
    %1476 = vmatpush1.msra.mxu0 0.0
    %1477 = vmatprep.subr.mxu0 0.0
    %1478 = vmatpush1.msra.mxu0 0.0
    %1479 = vmatprep.subr.mxu0 0.0
    %1480 = vmatpush1.msra.mxu0 0.0
    %1481 = vmatprep.subr.mxu0 0.0
    %1482 = vmatpush1.msra.mxu0 0.0
    %1483 = vmatprep.subr.mxu0 0.0
    %1484 = vmatpush1.msra.mxu0 0.0
    %1485 = vmatprep.mubr.f32.mxu0 0.0
    %1486 = vmatmul.mubr.f32.gmra.mrb[0].mxu0 %v1413
    %v1487 = vpop.f32.mrb[0].mxu0
    %v1488 = vadd.f32 0.0, %v1487
    %v1489 = vpop.f32.mrb[0].mxu0
    %1490 = vmatprep.mubr.f32.mxu0 0.0
    %1491 = vmatmul.mubr.f32.gmra.mrb[0].mxu0 %v1416
    %v1492 = vpop.f32.mrb[0].mxu0
    %v1493 = vadd.f32 0.0, %v1492
    %v1494 = vpop.f32.mrb[0].mxu0
    %1495 = vdwg.mxu0
    %v1496 = vpack.c.bf16 %v1228, %v1227
    %v1497 = vld [vmem:[%s49] sm:$0xf]
    %v1498 = vld [vmem:[%s49 + $0x4] sm:$0xf]
    %v1499 = vld [vmem:[%s49 + $0x8] sm:$0xf]
    %v1500 = vld [vmem:[%s49 + $0xc] sm:$0xf]
    %v1501 = vld [vmem:[%s49 + $0x10] sm:$0xf]
    %v1502 = vld [vmem:[%s49 + $0x14] sm:$0xf]
    %v1503 = vld [vmem:[%s49 + $0x18] sm:$0xf]
    %v1504 = vld [vmem:[%s49 + $0x1c] sm:$0xf]
    %v1505 = vld [vmem:[%s49 + $0x20] sm:$0xf]
    %v1506 = vld [vmem:[%s49 + $0x24] sm:$0xf]
    %v1507 = vld [vmem:[%s49 + $0x28] sm:$0xf]
    %v1508 = vld [vmem:[%s49 + $0x2c] sm:$0xf]
    %v1509 = vld [vmem:[%s49 + $0x30] sm:$0xf]
    %v1510 = vld [vmem:[%s49 + $0x34] sm:$0xf]
    %v1511 = vld [vmem:[%s49 + $0x38] sm:$0xf]
    %v1512 = vld [vmem:[%s49 + $0x3c] sm:$0xf]
    %v1529 = vunpack.c.l.b16 %v1497
    %v1530 = vunpack.c.l.b16 %v1498
    %v1531 = vunpack.c.l.b16 %v1499
    %v1532 = vunpack.c.l.b16 %v1500
    %v1533 = vunpack.c.l.b16 %v1501
    %v1534 = vunpack.c.l.b16 %v1502
    %v1535 = vunpack.c.l.b16 %v1503
    %v1536 = vunpack.c.l.b16 %v1504
    %v1537 = vunpack.c.l.b16 %v1505
    %v1538 = vunpack.c.l.b16 %v1506
    %v1539 = vunpack.c.l.b16 %v1507
    %v1540 = vunpack.c.l.b16 %v1508
    %v1541 = vunpack.c.l.b16 %v1509
    %v1542 = vunpack.c.l.b16 %v1510
    %v1543 = vunpack.c.l.b16 %v1511
    %v1544 = vunpack.c.l.b16 %v1512
    %v1545 = vpack.c.b16 %v1530, %v1529
    %v1546 = vpack.c.b16 %v1532, %v1531
    %v1547 = vpack.c.b16 %v1534, %v1533
    %v1548 = vpack.c.b16 %v1536, %v1535
    %v1549 = vpack.c.b16 %v1538, %v1537
    %v1550 = vpack.c.b16 %v1540, %v1539
    %v1551 = vpack.c.b16 %v1542, %v1541
    %v1552 = vpack.c.b16 %v1544, %v1543
    %1561 = vmatprep.subr.bf16.mxu0 0
    %1562 = vmatpush1.bf16.msra.mxu0 %v1545
    %1563 = vmatprep.subr.bf16.mxu0 0
    %1564 = vmatpush1.bf16.msra.mxu0 %v1546
    %1565 = vmatprep.subr.bf16.mxu0 0
    %1566 = vmatpush1.bf16.msra.mxu0 %v1547
    %1567 = vmatprep.subr.bf16.mxu0 0
    %1568 = vmatpush1.bf16.msra.mxu0 %v1548
    %1569 = vmatprep.subr.bf16.mxu0 0
    %1570 = vmatpush1.bf16.msra.mxu0 %v1549
    %1571 = vmatprep.subr.bf16.mxu0 0
    %1572 = vmatpush1.bf16.msra.mxu0 %v1550
    %1573 = vmatprep.subr.bf16.mxu0 0
    %1574 = vmatpush1.bf16.msra.mxu0 %v1551
    %1575 = vmatprep.subr.bf16.mxu0 0
    %1576 = vmatpush1.bf16.msra.mxu0 %v1552
    %1577 = vmatprep.subr.bf16.mxu0 0
    %1578 = vmatpush1.bf16.msra.mxu0 0
    %1579 = vmatprep.subr.bf16.mxu0 0
    %1580 = vmatpush1.bf16.msra.mxu0 0
    %1581 = vmatprep.subr.bf16.mxu0 0
    %1582 = vmatpush1.bf16.msra.mxu0 0
    %1583 = vmatprep.subr.bf16.mxu0 0
    %1584 = vmatpush1.bf16.msra.mxu0 0
    %1585 = vmatprep.subr.bf16.mxu0 0
    %1586 = vmatpush1.bf16.msra.mxu0 0
    %1587 = vmatprep.subr.bf16.mxu0 0
    %1588 = vmatpush1.bf16.msra.mxu0 0
    %1589 = vmatprep.subr.bf16.mxu0 0
    %1590 = vmatpush1.bf16.msra.mxu0 0
    %1591 = vmatprep.subr.bf16.mxu0 0
    %1592 = vmatpush1.bf16.msra.mxu0 0
    %1593 = vmatprep.mubr.bf16.mxu0 0
    %1594 = vmatmul.mubr.bf16.gmra.mrb[0].mxu0 %v1496
    %v1595 = vpop.f32.mrb[0].mxu0
    %v1596 = vadd.f32 %v1488, %v1595
    %v1597 = vpop.f32.mrb[0].mxu0
    %v1598 = vpop.f32.mrb[0].mxu0
    %v1599 = vadd.f32 %v1493, %v1598
    %v1600 = vpop.f32.mrb[0].mxu0
    %1601 = vdwg.mxu0
    %v1602 = vld [vmem:[%s53] sm:$0x1]
    %v1604 = vlaneseq
    %v1605 = vshrl.u32 %v1604, 7
    %v1606 = vsub.s32 0, %v1605
    %v1607 = vrot.slane %v1602, %v1606
    %v1609 = vadd.f32 %v1596, %v1607
    %v1610 = vadd.f32 %v1599, %v1607
    %v1611 = vld [vmem:[%s55] sm:$0x1]
    %v1612 = vld [vmem:[%s57] sm:$0x1]
    %v1613 = vadd.f32 %v1609, %v1610
    %v1614 = vrot.slane %v1613, 4
    %v1615 = vadd.f32 %v1613, %v1614
    %v1616 = vrot.slane %v1615, 2
    %v1617 = vadd.f32 %v1615, %v1616
    %v1618 = vrot.slane %v1617, 1
    %v1619 = vadd.f32 %v1617, %v1618
    %v1620 = vmul.f32 %v1619, %v692
    %v1621 = vsub.f32 %v1609, %v1620
    %v1622 = vsub.f32 %v1610, %v1620
    %v1623 = vmul.f32 %v1621, %v1621
    %v1624 = vmul.f32 %v1622, %v1622
    %v1625 = vadd.f32 %v1623, %v1624
    %v1626 = vrot.slane %v1625, 4
    %v1627 = vadd.f32 %v1625, %v1626
    %v1628 = vrot.slane %v1627, 2
    %v1629 = vadd.f32 %v1627, %v1628
    %v1630 = vrot.slane %v1629, 1
    %v1631 = vadd.f32 %v1629, %v1630
    %v1632 = vmul.f32 %v1631, %v692
    %v1633 = vadd.f32 %v1632, 1e-05
    %v1634 = vrsqrt.pop %v1633
    %v1635 = vmul.f32 %v1621, %v1634
    %v1636 = vmul.f32 %v1622, %v1634
    %v1638 = vlaneseq
    %v1639 = vshrl.u32 %v1638, 7
    %v1640 = vsub.s32 0, %v1639
    %v1641 = vrot.slane %v1611, %v1640
    %v1643 = vmul.f32 %v1635, %v1641
    %v1644 = vmul.f32 %v1636, %v1641
    %v1646 = vlaneseq
    %v1647 = vshrl.u32 %v1646, 7
    %v1648 = vsub.s32 0, %v1647
    %v1649 = vrot.slane %v1612, %v1648
    %v1651 = vadd.f32 %v1643, %v1649
    %v1652 = vadd.f32 %v1644, %v1649
    %vm1653 = vcmp.gt.f32.partialorder %v1651, 0.0
    %vm1654 = vcmp.gt.f32.partialorder %v1652, 0.0
    %v1655 = vmul.f32 %v1651, 0.01
    %v1656 = vmul.f32 %v1652, 0.01
    %v1657 = vsel %vm1653, %v1651, %v1655
    %v1658 = vsel %vm1654, %v1652, %v1656
    %v1659 = vpack.c.bf16 %v1658, %v1657
    %v1660 = vld [vmem:[#allocation39] sm:$0xf]
    %v1661 = vld [vmem:[#allocation39 + $0x4] sm:$0xf]
    %v1662 = vld [vmem:[#allocation39 + $0x8] sm:$0xf]
    %v1663 = vld [vmem:[#allocation39 + $0xc] sm:$0xf]
    %v1664 = vld [vmem:[#allocation39 + $0x10] sm:$0xf]
    %v1665 = vld [vmem:[#allocation39 + $0x14] sm:$0xf]
    %v1666 = vld [vmem:[#allocation39 + $0x18] sm:$0xf]
    %v1667 = vld [vmem:[#allocation39 + $0x1c] sm:$0xf]
    %v1668 = vld [vmem:[#allocation39 + $0x20] sm:$0xf]
    %v1669 = vld [vmem:[#allocation39 + $0x24] sm:$0xf]
    %v1670 = vld [vmem:[#allocation39 + $0x28] sm:$0xf]
    %v1671 = vld [vmem:[#allocation39 + $0x2c] sm:$0xf]
    %v1672 = vld [vmem:[#allocation39 + $0x30] sm:$0xf]
    %v1673 = vld [vmem:[#allocation39 + $0x34] sm:$0xf]
    %v1674 = vld [vmem:[#allocation39 + $0x38] sm:$0xf]
    %v1675 = vld [vmem:[#allocation39 + $0x3c] sm:$0xf]
    %v1676 = vld [vmem:[%s61] sm:$0x1]
    %v1678 = vlaneseq
    %v1679 = vshrl.u32 %v1678, 7
    %v1680 = vsub.s32 0, %v1679
    %v1681 = vrot.slane %v1676, %v1680
    %v1699 = vunpack.c.l.b16 %v1660
    %v1700 = vunpack.c.l.b16 %v1661
    %v1701 = vunpack.c.l.b16 %v1662
    %v1702 = vunpack.c.l.b16 %v1663
    %v1703 = vunpack.c.l.b16 %v1664
    %v1704 = vunpack.c.l.b16 %v1665
    %v1705 = vunpack.c.l.b16 %v1666
    %v1706 = vunpack.c.l.b16 %v1667
    %v1707 = vunpack.c.l.b16 %v1668
    %v1708 = vunpack.c.l.b16 %v1669
    %v1709 = vunpack.c.l.b16 %v1670
    %v1710 = vunpack.c.l.b16 %v1671
    %v1711 = vunpack.c.l.b16 %v1672
    %v1712 = vunpack.c.l.b16 %v1673
    %v1713 = vunpack.c.l.b16 %v1674
    %v1714 = vunpack.c.l.b16 %v1675
    %v1715 = vpack.c.b16 %v1700, %v1699
    %v1716 = vpack.c.b16 %v1702, %v1701
    %v1717 = vpack.c.b16 %v1704, %v1703
    %v1718 = vpack.c.b16 %v1706, %v1705
    %v1719 = vpack.c.b16 %v1708, %v1707
    %v1720 = vpack.c.b16 %v1710, %v1709
    %v1721 = vpack.c.b16 %v1712, %v1711
    %v1722 = vpack.c.b16 %v1714, %v1713
    %1731 = vmatprep.subr.bf16.mxu0 0
    %1732 = vmatpush1.bf16.msra.mxu0 %v1715
    %1733 = vmatprep.subr.bf16.mxu0 0
    %1734 = vmatpush1.bf16.msra.mxu0 %v1716
    %1735 = vmatprep.subr.bf16.mxu0 0
    %1736 = vmatpush1.bf16.msra.mxu0 %v1717
    %1737 = vmatprep.subr.bf16.mxu0 0
    %1738 = vmatpush1.bf16.msra.mxu0 %v1718
    %1739 = vmatprep.subr.bf16.mxu0 0
    %1740 = vmatpush1.bf16.msra.mxu0 %v1719
    %1741 = vmatprep.subr.bf16.mxu0 0
    %1742 = vmatpush1.bf16.msra.mxu0 %v1720
    %1743 = vmatprep.subr.bf16.mxu0 0
    %1744 = vmatpush1.bf16.msra.mxu0 %v1721
    %1745 = vmatprep.subr.bf16.mxu0 0
    %1746 = vmatpush1.bf16.msra.mxu0 %v1722
    %1747 = vmatprep.subr.bf16.mxu0 0
    %1748 = vmatpush1.bf16.msra.mxu0 0
    %1749 = vmatprep.subr.bf16.mxu0 0
    %1750 = vmatpush1.bf16.msra.mxu0 0
    %1751 = vmatprep.subr.bf16.mxu0 0
    %1752 = vmatpush1.bf16.msra.mxu0 0
    %1753 = vmatprep.subr.bf16.mxu0 0
    %1754 = vmatpush1.bf16.msra.mxu0 0
    %1755 = vmatprep.subr.bf16.mxu0 0
    %1756 = vmatpush1.bf16.msra.mxu0 0
    %1757 = vmatprep.subr.bf16.mxu0 0
    %1758 = vmatpush1.bf16.msra.mxu0 0
    %1759 = vmatprep.subr.bf16.mxu0 0
    %1760 = vmatpush1.bf16.msra.mxu0 0
    %1761 = vmatprep.subr.bf16.mxu0 0
    %1762 = vmatpush1.bf16.msra.mxu0 0
    %1763 = vmatprep.mubr.bf16.mxu0 0
    %1764 = vmatmul.mubr.bf16.gmra.mrb[0].mxu0 %v1659
    %v1765 = vpop.f32.mrb[0].mxu0
    %v1766 = vadd.f32 %v1681, %v1765
    %v1767 = vpop.f32.mrb[0].mxu0
    %v1768 = vpop.f32.mrb[0].mxu0
    %v1769 = vadd.f32 %v1681, %v1768
    %v1770 = vpop.f32.mrb[0].mxu0
    %1771 = vdwg.mxu0
    %v1772 = vld [vmem:[%s63] sm:$0x1]
    %v1773 = vld [vmem:[%s65] sm:$0x1]
    %v1774 = vadd.f32 %v1766, %v1769
    %v1775 = vrot.slane %v1774, 4
    %v1776 = vadd.f32 %v1774, %v1775
    %v1777 = vrot.slane %v1776, 2
    %v1778 = vadd.f32 %v1776, %v1777
    %v1779 = vrot.slane %v1778, 1
    %v1780 = vadd.f32 %v1778, %v1779
    %v1781 = vmul.f32 %v1780, %v692
    %v1782 = vsub.f32 %v1766, %v1781
    %v1783 = vsub.f32 %v1769, %v1781
    %v1784 = vmul.f32 %v1782, %v1782
    %v1785 = vmul.f32 %v1783, %v1783
    %v1786 = vadd.f32 %v1784, %v1785
    %v1787 = vrot.slane %v1786, 4
    %v1788 = vadd.f32 %v1786, %v1787
    %v1789 = vrot.slane %v1788, 2
    %v1790 = vadd.f32 %v1788, %v1789
    %v1791 = vrot.slane %v1790, 1
    %v1792 = vadd.f32 %v1790, %v1791
    %v1793 = vmul.f32 %v1792, %v692
    %v1794 = vadd.f32 %v1793, 1e-05
    %v1795 = vrsqrt.pop %v1794
    %v1796 = vmul.f32 %v1782, %v1795
    %v1797 = vmul.f32 %v1783, %v1795
    %v1799 = vlaneseq
    %v1800 = vshrl.u32 %v1799, 7
    %v1801 = vsub.s32 0, %v1800
    %v1802 = vrot.slane %v1772, %v1801
    %v1804 = vmul.f32 %v1796, %v1802
    %v1805 = vmul.f32 %v1797, %v1802
    %v1807 = vlaneseq
    %v1808 = vshrl.u32 %v1807, 7
    %v1809 = vsub.s32 0, %v1808
    %v1810 = vrot.slane %v1773, %v1809
    %v1812 = vadd.f32 %v1804, %v1810
    %v1813 = vadd.f32 %v1805, %v1810
    %vm1814 = vcmp.gt.f32.partialorder %v1812, 0.0
    %vm1815 = vcmp.gt.f32.partialorder %v1813, 0.0
    %v1816 = vmul.f32 %v1812, 0.01
    %v1817 = vmul.f32 %v1813, 0.01
    %v1818 = vsel %vm1814, %v1812, %v1816
    %v1819 = vsel %vm1815, %v1813, %v1817
    %v1820 = vld [vmem:[%s67] sm:$0x1]
    %v1822 = vlaneseq
    %v1823 = vshrl.u32 %v1822, 7
    %v1824 = vsub.s32 0, %v1823
    %v1825 = vrot.slane %v1820, %v1824
    %v1827 = vmul.f32 %v1818, %v1825
    %v1828 = vmul.f32 %v1819, %v1825
    %1829 = vadd.xlane.f32.xlu0 %v1827
    %v1830 = vpop.xlane.xlu0 %1829
    %1831 = vadd.xlane.f32.xlu0 %v1828
    %v1832 = vpop.xlane.xlu0 %1831
    %v1833 = vld [vmem:[#allocation5] sm:$0x1]
    %v1835 = vlaneseq
    %v1836 = vshrl.u32 %v1835, 7
    %v1837 = vsub.s32 0, %v1836
    %v1838 = vrot.slane %v1833, %v1837
    %v1840 = vadd.f32 %v1830, %v1838
    %v1841 = vadd.f32 %v1832, %v1838
    %vm1842 = vcmask 7168
    %1843 = vst.msk [vmem:[%s71] sm:$0xff] %vm1842, %v1840
    %1844 = vst.msk [vmem:[%s71 + $0x8] sm:$0xff] %vm1842, %v1841
    // Predicated region
    $region258: #{tpu_custom_call.1} parent=1 // pred_check
      _
    $region259: #{tpu_custom_call.1} parent=1 // pred_check_branch
      %1846 = sbr.rel (0) target = $region261
    $region260: #{tpu_custom_call.1} parent=1 // pred_region
      _
    $region261: #{tpu_custom_call.1} parent=1 // pred_fallthru
      _
    // Predicated region
    $region262: #{tpu_custom_call.1} parent=1 // pred_check
      _
    $region263: #{tpu_custom_call.1} parent=1 // pred_check_branch
      %1848 = sbr.rel (0) target = $region265
    $region264: #{tpu_custom_call.1} parent=1 // pred_region
      _
    $region265: #{tpu_custom_call.1} parent=1 // pred_fallthru
      _
    %1849 = vsyncpa [#allocation7], 1
    %1850 = vsyncpa [#allocation13], 1
    %1851 = vsyncpa [#allocation16], 1
    %1852 = vsyncpa [#allocation19], 1
    %1853 = vsyncpa [#allocation22], 1
    %1854 = vsyncpa [#allocation25], 1
    %1855 = vsyncpa [#allocation28], 1
    %1856 = vsyncpa [#allocation31], 1
    %1857 = vsyncpa [#allocation34], 1
    %1858 = vsyncpa [#allocation37], 1
    %1859 = vsyncpa [#allocation40], 1
    %1860 = vsyncpa [#allocation8], 1
    %1861 = vsyncpa [#allocation11], 1

</llo_original>
